<compile_context>
chip_gen: v6e
topology: v6e:2x2x1
jax: 0.10.0
libtpu: 0.0.40
codegen_flags: <defaults>
</compile_context>

<pallas_src>
import jax
import jax.numpy as jnp
from jax.experimental import pallas as pl
from jax.experimental.pallas import tpu as pltpu


# Layer registry copied verbatim from the PyTorch module.
LAYER_NAMES_RES_DIM = {
    'down_blocks_0_attentions_0_transformer_blocks_0_attn2': (64, 320),
    'down_blocks_0_attentions_1_transformer_blocks_0_attn2': (64, 320),
    'down_blocks_1_attentions_0_transformer_blocks_0_attn2': (32, 640),
    'down_blocks_1_attentions_1_transformer_blocks_0_attn2': (32, 640),
    'down_blocks_2_attentions_0_transformer_blocks_0_attn2': (16, 1280),
    'down_blocks_2_attentions_1_transformer_blocks_0_attn2': (16, 1280),
    'mid_block_attentions_0_transformer_blocks_0_attn2': (8, 1280),
    'up_blocks_1_attentions_0_transformer_blocks_0_attn2': (16, 1280),
    'up_blocks_1_attentions_1_transformer_blocks_0_attn2': (16, 1280),
    'up_blocks_1_attentions_2_transformer_blocks_0_attn2': (16, 1280),
    'up_blocks_2_attentions_0_transformer_blocks_0_attn2': (32, 640),
    'up_blocks_2_attentions_1_transformer_blocks_0_attn2': (32, 640),
    'up_blocks_2_attentions_2_transformer_blocks_0_attn2': (32, 640),
    'up_blocks_3_attentions_0_transformer_blocks_0_attn2': (64, 320),
    'up_blocks_3_attentions_1_transformer_blocks_0_attn2': (64, 320),
    'up_blocks_3_attentions_2_transformer_blocks_0_attn2': (64, 320),
}

_TILE_BUDGET_BYTES = 2 << 20      # per-tile budget: 6-buffer working set <= ~12 MiB
_VMEM_LIMIT_BYTES = 32 << 20      # explicit headroom; safe on v5e/v6e (128 MiB) and v7x (64 MiB)


def _pe_add_kernel(x_ref, pe_ref, o_ref):
    # Cast-in-kernel: any PE/activation dtype mismatch is resolved on the otherwise
    # idle VPU, hidden under the DMA-bound add (no standalone XLA cast of the PE).
    o_ref[...] = x_ref[...].astype(o_ref.dtype) + pe_ref[...].astype(o_ref.dtype)


def _choose_row_tile(m, n, itemsize, budget_bytes=_TILE_BUDGET_BYTES, min_tiles=1):
    """Largest row tile t such that: t divides m, t is a multiple of 8 (or t == m),
    one tile stays under `budget_bytes`, and m // t >= min_tiles.  If nothing fits
    the budget, fall back to the LARGEST legal divisor (never a tiny 8-row tile)."""
    cap = m // min_tiles if min_tiles > 1 else m
    cap = max(cap, 1)
    best_fit = None   # largest legal divisor that also fits the byte budget
    best_any = None   # largest legal divisor under the min_tiles cap (budget ignored)
    for t in range(1, m + 1):
        if m % t:
            continue
        if t % 8 and t != m:            # (8, x) sublane rule unless full-dim block
            continue
        if t > cap and not (min_tiles <= 1 and t == m):
            continue
        if best_any is None or t > best_any:
            best_any = t
        if t * n * itemsize <= budget_bytes and (best_fit is None or t > best_fit):
            best_fit = t
    if best_fit is not None:
        return best_fit
    if best_any is not None:
        return best_any
    return m


def _pe_broadcast_add(x_bmn, pe_mn):
    """out[b] = x[b] + pe  for x: (B, M, N), pe: (M, N).  Lane dim N kept whole."""
    B, M, N = x_bmn.shape
    assert pe_mn.shape == (M, N), "PE layout mismatch"
    out_dtype = jnp.promote_types(x_bmn.dtype, pe_mn.dtype)   # torch-style promotion
    itemsize = max(jnp.dtype(x_bmn.dtype).itemsize,
                   jnp.dtype(pe_mn.dtype).itemsize,
                   jnp.dtype(out_dtype).itemsize)
    # If the batch alone cannot supply 2 grid steps, force >= 2 row tiles so both
    # v7x TensorCores get work and the pipeline has something to overlap.
    min_tiles = 1 if B >= 2 else 2
    tM = _choose_row_tile(M, N, itemsize, min_tiles=min_tiles)

    return pl.pallas_call(
        _pe_add_kernel,
        out_shape=jax.ShapeDtypeStruct((B, M, N), out_dtype),
        grid_spec=pltpu.PrefetchScalarGridSpec(
            num_scalar_prefetch=0,
            # Rows outermost, batch innermost: PE block index is constant across the
            # inner (batch) steps, so its re-DMA is elided.
            grid=(M // tM, B),
            in_specs=[
                # Batch dim squeezed out of the kernel view -> kernel sees (tM, N).
                pl.BlockSpec((None, tM, N), lambda m, b: (b, m, 0)),
                pl.BlockSpec((tM, N), lambda m, b: (m, 0)),
            ],
            out_specs=pl.BlockSpec((None, tM, N), lambda m, b: (b, m, 0)),
        ),
        compiler_params=pltpu.CompilerParams(
            dimension_semantics=("parallel", "parallel"),
            vmem_limit_bytes=_VMEM_LIMIT_BYTES,
        ),
    )(x_bmn, pe_mn)


def _flat_add(x_flat_bf, pe_flat_f):
    """x: (B, F), pe: (F,) with F % 128 == 0 -> lane-dense (B, F//128, 128) add."""
    B, F = x_flat_bf.shape
    R = F // 128
    out = _pe_broadcast_add(x_flat_bf.reshape(B, R, 128), pe_flat_f.reshape(R, 128))
    return out.reshape(B, F)


def _apply_pe_nchw(x, pe_cl):
    """x: (B, C, H, W) NCHW; pe_cl: cached, pre-transposed (C, H*W) table."""
    B, C, H, W = x.shape
    L = H * W
    assert pe_cl.shape == (C, L), "PE shape mismatch"
    F = C * L
    if F % 128 == 0:
        # Free contiguous reshapes (no transpose of the big tensor); 128-lane dense.
        out = _flat_add(x.reshape(B, F), pe_cl.reshape(F))
    else:
        out = _pe_broadcast_add(x.reshape(B, C, L), pe_cl).reshape(B, C * L)
    return out.reshape(B, C, H, W)


def _apply_pe_seq(x, pe_ld):
    """x: (B, L, D); pe_ld: cached (L, D) table."""
    B, L, D = x.shape
    assert pe_ld.shape == (L, D), "PE shape mismatch"
    F = L * D
    if F % 128 == 0:
        return _flat_add(x.reshape(B, F), pe_ld.reshape(F)).reshape(B, L, D)
    return _pe_broadcast_add(x, pe_ld)


def single_positional_embedding(x, pe):
    """Standalone equivalent of SinglePositionalEmbedding.forward.
    pe: (1, max_len, d_model).  NOTE: prefers the module path below, which caches
    the transposed PE layout once instead of computing it per call."""
    if x.ndim == 4:
        B, C, H, W = x.shape
        L = H * W
        assert pe.shape[-2] == L and pe.shape[-1] == C, "PE shape mismatch"
        pe_cl = jnp.transpose(pe.reshape(L, C), (1, 0))
        return _apply_pe_nchw(x, pe_cl)
    B, L, D = x.shape
    assert pe.shape[-2] == L and pe.shape[-1] == D, "PE shape mismatch"
    return _apply_pe_seq(x, pe.reshape(L, D))


class AllPositionalEmbedding:
    """JAX port of the PyTorch AllPositionalEmbedding module."""

    layer_names_res_dim = LAYER_NAMES_RES_DIM

    def __init__(self, key, param_dtype=jnp.float32):
        self.positional_encodings = {}   # (1, L, D) — mirrors the torch Parameter
        self._pe_seq = {}                # (L, D)    — for 3D (B, L, D) inputs
        self._pe_chan = {}               # (D, L)    — pre-transposed ONCE for NCHW inputs
        for i, (name, (res, dim)) in enumerate(self.layer_names_res_dim.items()):
            L = res * res
            k = jax.random.fold_in(key, i)
            pe = jax.random.normal(k, (1, L, dim), dtype=param_dtype)
            self.positional_encodings[name] = pe
            pe_ld = pe.reshape(L, dim)
            self._pe_seq[name] = pe_ld
            # One-time transpose at init (perf review): avoids re-reading / re-writing
            # the PE table through HBM on every forward call.
            self._pe_chan[name] = jnp.transpose(pe_ld, (1, 0))

    def __call__(self, x, layer_name):
        if layer_name not in self.positional_encodings:
            return x
        if x.ndim == 4:
            return _apply_pe_nchw(x, self._pe_chan[layer_name])
        return _apply_pe_seq(x, self._pe_seq[layer_name])


# ----------------------------- reference / tests -----------------------------

def _reference_4d(x, pe):
    B, C, H, W = x.shape
    L = H * W
    x_bld = jnp.transpose(x, (0, 2, 3, 1)).reshape(B, L, C)
    out = x_bld + pe.reshape(L, C)[None]
    return jnp.transpose(out.reshape(B, H, W, C), (0, 3, 1, 2))


if __name__ == "__main__":
    key = jax.random.PRNGKey(0)
    k_params, k_x4, k_x3, k_x3b = jax.random.split(key, 4)
    module = AllPositionalEmbedding(k_params)
    B = 2

    # --- 4D NCHW path: res=16, dim=1280 layer ---
    name4 = 'down_blocks_2_attentions_0_transformer_blocks_0_attn2'
    res4, dim4 = AllPositionalEmbedding.layer_names_res_dim[name4]
    x4 = jax.random.normal(k_x4, (B, dim4, res4, res4), dtype=jnp.float32)
    out4 = jax.block_until_ready(module(x4, name4))
    ref4 = _reference_4d(x4, module.positional_encodings[name4])
    assert out4.shape == x4.shape and out4.dtype == x4.dtype
    assert jnp.allclose(out4, ref4, rtol=1e-6, atol=1e-6)

    # --- 3D path: mid block (res=8 -> L=64, dim=1280) ---
    name3 = 'mid_block_attentions_0_transformer_blocks_0_attn2'
    res3, dim3 = AllPositionalEmbedding.layer_names_res_dim[name3]
    x3 = jax.random.normal(k_x3, (B, res3 * res3, dim3), dtype=jnp.float32)
    out3 = jax.block_until_ready(module(x3, name3))
    ref3 = x3 + module.positional_encodings[name3].reshape(res3 * res3, dim3)[None]
    assert out3.shape == x3.shape
    assert jnp.allclose(out3, ref3, rtol=1e-6, atol=1e-6)

    # --- 3D path with dim=320 (not itself 128-aligned): exercises the flat layout ---
    name3b = 'down_blocks_0_attentions_0_transformer_blocks_0_attn2'
    res3b, dim3b = AllPositionalEmbedding.layer_names_res_dim[name3b]
    x3b = jax.random.normal(k_x3b, (B, res3b * res3b, dim3b), dtype=jnp.float32)
    out3b = jax.block_until_ready(module(x3b, name3b))
    ref3b = x3b + module.positional_encodings[name3b].reshape(res3b * res3b, dim3b)[None]
    assert out3b.shape == x3b.shape
    assert jnp.allclose(out3b, ref3b, rtol=1e-6, atol=1e-6)

    # --- bf16 activations: in-kernel cast, torch-style promotion to fp32 output ---
    x3_bf16 = x3.astype(jnp.bfloat16)
    out_bf = jax.block_until_ready(module(x3_bf16, name3))
    ref_bf = x3_bf16.astype(jnp.float32) + \
        module.positional_encodings[name3].reshape(res3 * res3, dim3)[None]
    assert out_bf.dtype == jnp.float32
    assert jnp.allclose(out_bf, ref_bf, rtol=1e-6, atol=1e-6)

    # --- Unknown layer: identity pass-through ---
    assert module(x4, 'not_a_registered_layer') is x4

    print("KERNEL_OK")
</pallas_src>

<mosaic_0001>
module attributes {stable_mosaic.version = 11 : i64} {
  func.func @_pe_add_kernel(%arg0: i32, %arg1: i32, %arg2: memref<1x2560x128xf32, #tpu.memory_space<vmem>>, %arg3: memref<2560x128xf32, #tpu.memory_space<vmem>>, %arg4: memref<1x2560x128xf32, #tpu.memory_space<vmem>>) attributes {dimension_semantics = [#tpu.dimension_semantics<parallel>, #tpu.dimension_semantics<parallel>], iteration_bounds = array<i64: 1, 2>, scalar_prefetch = 0 : i64, scratch_operands = 0 : i64, tpu.core_type = #tpu.core_type<tc>, window_params = [{transform_indices = @transform_0, window_bounds = array<i64: 1, 2560, 128>}, {transform_indices = @transform_1, window_bounds = array<i64: 2560, 128>}, {transform_indices = @transform_2, window_bounds = array<i64: 1, 2560, 128>}]} {
    %c0 = arith.constant 0 : index
    %c0_0 = arith.constant 0 : index
    %c0_1 = arith.constant 0 : index
    %0 = vector.load %arg2[%c0, %c0_0, %c0_1] : memref<1x2560x128xf32, #tpu.memory_space<vmem>>, vector<1x2560x128xf32>
    %1 = vector.shape_cast %0 : vector<1x2560x128xf32> to vector<2560x128xf32>
    %c0_2 = arith.constant 0 : index
    %c0_3 = arith.constant 0 : index
    %2 = vector.load %arg3[%c0_2, %c0_3] : memref<2560x128xf32, #tpu.memory_space<vmem>>, vector<2560x128xf32>
    %3 = arith.addf %1, %2 : vector<2560x128xf32>
    %c0_4 = arith.constant 0 : index
    %c0_5 = arith.constant 0 : index
    %c0_6 = arith.constant 0 : index
    %4 = vector.load %arg4[%c0_4, %c0_5, %c0_6] : memref<1x2560x128xf32, #tpu.memory_space<vmem>>, vector<1x2560x128xf32>
    %5 = vector.shape_cast %4 : vector<1x2560x128xf32> to vector<2560x128xf32>
    %6 = vector.shape_cast %3 : vector<2560x128xf32> to vector<1x2560x128xf32>
    tpu.vector_store %arg4[%c0_4, %c0_5, %c0_6], %6 {strides = array<i32>} : memref<1x2560x128xf32, #tpu.memory_space<vmem>>, vector<1x2560x128xf32>,
    return
  }
  func.func @transform_0(%arg0: i32, %arg1: i32) -> (i32, i32, i32) {
    %c0_i32 = arith.constant 0 : i32
    %c0_i32_0 = arith.constant 0 : i32
    return %arg1, %arg0, %c0_i32 : i32, i32, i32
  }
  func.func @transform_1(%arg0: i32, %arg1: i32) -> (i32, i32) {
    %c0_i32 = arith.constant 0 : i32
    %c0_i32_0 = arith.constant 0 : i32
    return %arg0, %c0_i32 : i32, i32
  }
  func.func @transform_2(%arg0: i32, %arg1: i32) -> (i32, i32, i32) {
    %c0_i32 = arith.constant 0 : i32
    %c0_i32_0 = arith.constant 0 : i32
    return %arg1, %arg0, %c0_i32 : i32, i32, i32
  }
}

</mosaic_0001>

<llo_original>
// kernel: tpu_custom_call.1
$region0: #{tpu_custom_call.1}
  #allocation0 [shape = 'u32[]', space=smem, size = 0x4, offset = 0x4, fixed_abs, tag = 'smem constant byte address 0x4 - core index']
  #allocation1 [shape = 'u32[144,128]{1,0:T(1,128)}', space=vmem, size = 0x12000, scoped, tag = 'internal scratch']
  %s0 = inlined_call_operand.hbm [shape: f32[2,2560,128], index: 0, kind: input, shape index: {}]
  %s1 = inlined_call_operand.hbm [shape: f32[2560,128], index: 1, kind: input, shape index: {}]
  %s2 = inlined_call_operand.hbm [shape: f32[2,2560,128], index: 2, kind: output, shape index: {}]
  %s3 = sld [smem:[#allocation0]]
  $region49: #{tpu_custom_call.1} parent=0
    _
  %s5 = ssub.s32 1, %s3
  %s6 = scalar_select 0, %s5, %s3
  $region1: #{tpu_custom_call.1} parent=0
    #allocation2 [shape = 'u8[2621440]{0}', space=vmem, size = 0x280000, scoped, tag = 'input window, operand 0']
    #allocation3 [shape = 's32[2]{0}', space=sflag, size = 0x8, scoped, tag = 'scoped memory for tpu_custom_call.1']
    #allocation4 [shape = 's32[2]{0}', space=sflag, size = 0x8, scoped, tag = 'scoped memory for tpu_custom_call.1']
    #allocation5 [shape = 'u8[1310720]{0}', space=vmem, size = 0x140000, scoped, tag = 'input window, operand 1, single buffered']
    #allocation6 [shape = 's32[1]{0}', space=sflag, size = 0x4, scoped, tag = 'scoped memory for tpu_custom_call.1']
    #allocation7 [shape = 'u8[2621440]{0}', space=vmem, size = 0x280000, scoped, tag = 'output window, operand 0']
    %7 = vsyncpa [#allocation3], 0
    %s8 = scalar_lea.sflag [#allocation3], 1
    %9 = vsyncpa %s8, 0
    %10 = vsyncpa [#allocation6], 0
    %11 = vsyncpa [#allocation4], 0
    %s12 = scalar_lea.sflag [#allocation4], 1
    %13 = vsyncpa %s12, 0
    loop: start=0, step=1, limit=4
    $region2: #{tpu_custom_call.1} parent=1 // loop_pre_header
      _
    $region3: #{tpu_custom_call.1} parent=1 // loop_header
      %s15 = sphi 0, %s19
      %p16 = scmp.ge.s32.totalorder %s15, 4
      %s22 = sphi 0, %s34
      %s23 = sphi 0, %s30
      %s24 = sphi 0, %s22
      %s25 = sphi 0, %s23
      %s26 = sphi 0, %s24
      %s27 = sphi 0, %s25
      %s39 = sphi 0, %s41
      %s42 = sphi 0, %s39
      %s43 = sphi 0, %s42
      %s59 = sphi 0, %s43
      %s65 = sphi 0, %s67
      %s68 = sphi 0, %s65
      %s69 = sphi 0, %s68
      %s85 = sphi 0, %s69
      %s93 = sphi 0, %s95
      %s96 = sphi 0, %s93
      %s97 = sphi 0, %s96
      %s113 = sphi 0, %s97
    $region4: #{tpu_custom_call.1} parent=1 // loop_header_branch
      %18 = sbr.rel (%p16) target = $region8
    $region5: #{tpu_custom_call.1} parent=1 // loop_body
      %s20 = ssub.s32 %s15, 1
      %s21 = ssub.s32 %s15, 2
      %s28 = sadd.s32 1, %s23
      %p29 = scmp.ge.s32.totalorder %s28, 2
      %s30 = scalar_select %p29, 0, %s28
      %s31 = sadd.s32 1, %s22
      %s32 = scalar_select %p29, %s31, %s22
      %p33 = scmp.ge.s32.totalorder %s32, 1
      %s34 = scalar_select %p33, 0, %s32
      %s35 = ssub.s32 %s23, %s30
      %s36 = ssub.s32 %s22, %s34
      %s37 = sor.u32 %s35, %s36
      %p38 = scmp.eq.s32.totalorder %s37, 0
      %s40 = sadd.s32 %s39, 1
      %s41 = scalar_select %p38, %s39, %s40
      %p44 = pneg %p38
      %p45 = scmp.eq.s32.totalorder %s15, 1
      %p46 = por %p44, %p45
      %p47 = scmp.ne.s32.totalorder %s39, %s42
      %p48 = scmp.eq.s32.totalorder %s15, 0
      %p49 = por %p47, %p48
      %p50 = scmp.ne.s32.totalorder %s39, %s42
      %p51 = scmp.eq.s32.totalorder %s20, 1
      %p52 = por %p50, %p51
      %p53 = scmp.ne.s32.totalorder %s42, %s43
      %p54 = scmp.eq.s32.totalorder %s20, 0
      %p55 = por %p53, %p54
      %p56 = scmp.ne.s32.totalorder %s42, %s43
      %p57 = scmp.eq.s32.totalorder %s21, 1
      %p58 = por %p56, %p57
      %p60 = scmp.ne.s32.totalorder %s43, %s59
      %p61 = scmp.eq.s32.totalorder %s21, 0
      %p62 = por %p60, %p61
      %s63 = ssub.s32 %s22, %s34
      %p64 = scmp.eq.s32.totalorder %s63, 0
      %s66 = sadd.s32 %s65, 1
      %s67 = scalar_select %p64, %s65, %s66
      %p70 = pneg %p64
      %p71 = scmp.eq.s32.totalorder %s15, 1
      %p72 = por %p70, %p71
      %p73 = scmp.ne.s32.totalorder %s65, %s68
      %p74 = scmp.eq.s32.totalorder %s15, 0
      %p75 = por %p73, %p74
      %p76 = scmp.ne.s32.totalorder %s65, %s68
      %p77 = scmp.eq.s32.totalorder %s20, 1
      %p78 = por %p76, %p77
      %p79 = scmp.ne.s32.totalorder %s68, %s69
      %p80 = scmp.eq.s32.totalorder %s20, 0
      %p81 = por %p79, %p80
      %p82 = scmp.ne.s32.totalorder %s68, %s69
      %p83 = scmp.eq.s32.totalorder %s21, 1
      %p84 = por %p82, %p83
      %p86 = scmp.ne.s32.totalorder %s69, %s85
      %p87 = scmp.eq.s32.totalorder %s21, 0
      %p88 = por %p86, %p87
      %s89 = ssub.s32 %s23, %s30
      %s90 = ssub.s32 %s22, %s34
      %s91 = sor.u32 %s89, %s90
      %p92 = scmp.eq.s32.totalorder %s91, 0
      %s94 = sadd.s32 %s93, 1
      %s95 = scalar_select %p92, %s93, %s94
      %p98 = pneg %p92
      %p99 = scmp.eq.s32.totalorder %s15, 1
      %p100 = por %p98, %p99
      %p101 = scmp.ne.s32.totalorder %s93, %s96
      %p102 = scmp.eq.s32.totalorder %s15, 0
      %p103 = por %p101, %p102
      %p104 = scmp.ne.s32.totalorder %s93, %s96
      %p105 = scmp.eq.s32.totalorder %s20, 1
      %p106 = por %p104, %p105
      %p107 = scmp.ne.s32.totalorder %s96, %s97
      %p108 = scmp.eq.s32.totalorder %s20, 0
      %p109 = por %p107, %p108
      %p110 = scmp.ne.s32.totalorder %s96, %s97
      %p111 = scmp.eq.s32.totalorder %s21, 1
      %p112 = por %p110, %p111
      %p114 = scmp.ne.s32.totalorder %s97, %s113
      %p115 = scmp.eq.s32.totalorder %s21, 0
      %p116 = por %p114, %p115
      %p117 = scmp.le.s32.totalorder 1, %s15
      %p118 = scmp.lt.s32.totalorder %s15, 3
      %p119 = pnand %p117, %p118
      %p120 = pneg %p119
      // Predicated region
      $region9: #{tpu_custom_call.1} parent=5 // pred_check
        _
      $region10: #{tpu_custom_call.1} parent=5 // pred_check_branch
        %122 = sbr.rel (%p119) target = $region12
      $region11: #{tpu_custom_call.1} parent=5 // pred_region
        %s123 = ssub.s32 %s15, 1
        // Predicated region
        $region13: #{tpu_custom_call.1} parent=11 // pred_check
          %p124 = pneg %p81
        $region14: #{tpu_custom_call.1} parent=11 // pred_check_branch
          %126 = sbr.rel (%p124) target = $region16
        $region15: #{tpu_custom_call.1} parent=11 // pred_region
          %s127 = smul.u32 320, %s24
          %s129 = ssub.s32 40960, 40960
          %130 = vsyncadd [#allocation6], %s129
          %s131 = smul.addr %s127, 128
          %s132 = scalar_lea.hbm %s1, %s131
          %s133 = sshll.u32 [#allocation5], 4
          %s134 = int_to_ptr.vmem [resolvable:$true] %s133
          %139 = dma.hbm_to_vmem [thread:$0]  %s132, 40960, %s134, [#allocation6], 128, 128, 8
        $region16: #{tpu_custom_call.1} parent=11 // pred_fallthru
          _
      $region12: #{tpu_custom_call.1} parent=5 // pred_fallthru
        _
      %p140 = scmp.lt.s32.totalorder %s15, 2
      // Predicated region
      $region17: #{tpu_custom_call.1} parent=5 // pred_check
        %p141 = pneg %p140
      $region18: #{tpu_custom_call.1} parent=5 // pred_check_branch
        %143 = sbr.rel (%p141) target = $region20
      $region19: #{tpu_custom_call.1} parent=5 // pred_region
        // Predicated region
        $region21: #{tpu_custom_call.1} parent=19 // pred_check
          %p144 = pneg %p49
        $region22: #{tpu_custom_call.1} parent=19 // pred_check_branch
          %146 = sbr.rel (%p144) target = $region24
        $region23: #{tpu_custom_call.1} parent=19 // pred_region
          %s147 = sand.u32 %s39, 1
          %s148 = scalar_lea.sflag [#allocation3], %s147
          %s149 = sand.u32 %s39, 1
          %s150 = smul.addr %s149, 2560
          %s151 = scalar_lea.vmem [#allocation2], %s150
          %s152 = smul.u32 320, %s22
          %s154 = ssub.s32 40960, 40960
          %155 = vsyncadd %s148, %s154
          %s156 = smul.addr %s23, 320
          %s157 = sadd.s32 %s152, %s156
          %s158 = smul.addr %s157, 128
          %s159 = scalar_lea.hbm %s0, %s158
          %s160 = sshll.u32 %s151, 4
          %s161 = int_to_ptr.vmem [resolvable:$true] %s160
          %166 = dma.hbm_to_vmem [thread:$0]  %s159, 40960, %s161, %s148, 128, 128, 8
        $region24: #{tpu_custom_call.1} parent=19 // pred_fallthru
          _
      $region20: #{tpu_custom_call.1} parent=5 // pred_fallthru
        _
      %p167 = scmp.le.s32.totalorder 1, %s15
      %p168 = scmp.lt.s32.totalorder %s15, 3
      %p169 = pnand %p167, %p168
      %p170 = pneg %p169
      // Predicated region
      $region25: #{tpu_custom_call.1} parent=5 // pred_check
        _
      $region26: #{tpu_custom_call.1} parent=5 // pred_check_branch
        %172 = sbr.rel (%p169) target = $region28
      $region27: #{tpu_custom_call.1} parent=5 // pred_region
        %s173 = ssub.s32 %s15, 1
        %s174 = sand.u32 %s42, 1
        %s175 = scalar_lea.sflag [#allocation3], %s174
        %s176 = sand.u32 %s42, 1
        %s177 = smul.addr %s176, 2560
        %s178 = scalar_lea.vmem [#allocation2], %s177
        // Predicated region
        $region29: #{tpu_custom_call.1} parent=27 // pred_check
          %p179 = pneg %p55
        $region30: #{tpu_custom_call.1} parent=27 // pred_check_branch
          %181 = sbr.rel (%p179) target = $region32
        $region31: #{tpu_custom_call.1} parent=27 // pred_region
          %182 = dma.done %s175, 40960
        $region32: #{tpu_custom_call.1} parent=27 // pred_fallthru
          _
        // Predicated region
        $region33: #{tpu_custom_call.1} parent=27 // pred_check
          %p183 = pneg %p81
        $region34: #{tpu_custom_call.1} parent=27 // pred_check_branch
          %185 = sbr.rel (%p183) target = $region36
        $region35: #{tpu_custom_call.1} parent=27 // pred_region
          %186 = dma.done [#allocation6], 40960
        $region36: #{tpu_custom_call.1} parent=27 // pred_fallthru
          _
        %s187 = sand.u32 %s42, 1
        %s188 = scalar_lea.sflag [#allocation3], %s187
        %s189 = sand.u32 %s42, 1
        %s190 = smul.addr %s189, 2560
        %s191 = scalar_lea.vmem [#allocation2], %s190
        %p192 = pneg %p55
        %p193 = pneg %p52
        %p194 = pneg %p81
        %p195 = pneg %p78
        %p196 = pneg %p109
        %p197 = pneg %p106
        %s198 = sand.u32 %s96, 1
        %s199 = scalar_lea.sflag [#allocation4], %s198
        %s200 = sand.u32 %s96, 1
        %s201 = smul.addr %s200, 2560
        %s202 = scalar_lea.vmem [#allocation7], %s201
        %s203 = smul.u32 320, %s24
        %s204 = smul.u32 320, %s24
        %s205 = smul.u32 320, %s24
        %v206 = vld [vmem:[%s178] sm:$0xff]
        %v207 = vld [vmem:[%s178 + $0x8] sm:$0xff]
        %v208 = vld [vmem:[%s178 + $0x10] sm:$0xff]
        %v209 = vld [vmem:[%s178 + $0x18] sm:$0xff]
        %v210 = vld [vmem:[%s178 + $0x20] sm:$0xff]
        %v211 = vld [vmem:[%s178 + $0x28] sm:$0xff]
        %v212 = vld [vmem:[%s178 + $0x30] sm:$0xff]
        %v213 = vld [vmem:[%s178 + $0x38] sm:$0xff]
        %v214 = vld [vmem:[%s178 + $0x40] sm:$0xff]
        %v215 = vld [vmem:[%s178 + $0x48] sm:$0xff]
        %v216 = vld [vmem:[%s178 + $0x50] sm:$0xff]
        %v217 = vld [vmem:[%s178 + $0x58] sm:$0xff]
        %v218 = vld [vmem:[%s178 + $0x60] sm:$0xff]
        %v219 = vld [vmem:[%s178 + $0x68] sm:$0xff]
        %v220 = vld [vmem:[%s178 + $0x70] sm:$0xff]
        %v221 = vld [vmem:[%s178 + $0x78] sm:$0xff]
        %v222 = vld [vmem:[%s178 + $0x80] sm:$0xff]
        %v223 = vld [vmem:[%s178 + $0x88] sm:$0xff]
        %v224 = vld [vmem:[%s178 + $0x90] sm:$0xff]
        %v225 = vld [vmem:[%s178 + $0x98] sm:$0xff]
        %v226 = vld [vmem:[%s178 + $0xa0] sm:$0xff]
        %v227 = vld [vmem:[%s178 + $0xa8] sm:$0xff]
        %v228 = vld [vmem:[%s178 + $0xb0] sm:$0xff]
        %v229 = vld [vmem:[%s178 + $0xb8] sm:$0xff]
        %v230 = vld [vmem:[%s178 + $0xc0] sm:$0xff]
        %v231 = vld [vmem:[%s178 + $0xc8] sm:$0xff]
        %v232 = vld [vmem:[%s178 + $0xd0] sm:$0xff]
        %v233 = vld [vmem:[%s178 + $0xd8] sm:$0xff]
        %v234 = vld [vmem:[%s178 + $0xe0] sm:$0xff]
        %v235 = vld [vmem:[%s178 + $0xe8] sm:$0xff]
        %v236 = vld [vmem:[%s178 + $0xf0] sm:$0xff]
        %v237 = vld [vmem:[%s178 + $0xf8] sm:$0xff]
        %v238 = vld [vmem:[%s178 + $0x100] sm:$0xff]
        %v239 = vld [vmem:[%s178 + $0x108] sm:$0xff]
        %v240 = vld [vmem:[%s178 + $0x110] sm:$0xff]
        %v241 = vld [vmem:[%s178 + $0x118] sm:$0xff]
        %v242 = vld [vmem:[%s178 + $0x120] sm:$0xff]
        %v243 = vld [vmem:[%s178 + $0x128] sm:$0xff]
        %v244 = vld [vmem:[%s178 + $0x130] sm:$0xff]
        %v245 = vld [vmem:[%s178 + $0x138] sm:$0xff]
        %v246 = vld [vmem:[%s178 + $0x140] sm:$0xff]
        %v247 = vld [vmem:[%s178 + $0x148] sm:$0xff]
        %v248 = vld [vmem:[%s178 + $0x150] sm:$0xff]
        %v249 = vld [vmem:[%s178 + $0x158] sm:$0xff]
        %v250 = vld [vmem:[%s178 + $0x160] sm:$0xff]
        %v251 = vld [vmem:[%s178 + $0x168] sm:$0xff]
        %v252 = vld [vmem:[%s178 + $0x170] sm:$0xff]
        %v253 = vld [vmem:[%s178 + $0x178] sm:$0xff]
        %v254 = vld [vmem:[%s178 + $0x180] sm:$0xff]
        %v255 = vld [vmem:[%s178 + $0x188] sm:$0xff]
        %v256 = vld [vmem:[%s178 + $0x190] sm:$0xff]
        %v257 = vld [vmem:[%s178 + $0x198] sm:$0xff]
        %v258 = vld [vmem:[%s178 + $0x1a0] sm:$0xff]
        %v259 = vld [vmem:[%s178 + $0x1a8] sm:$0xff]
        %v260 = vld [vmem:[%s178 + $0x1b0] sm:$0xff]
        %v261 = vld [vmem:[%s178 + $0x1b8] sm:$0xff]
        %v262 = vld [vmem:[%s178 + $0x1c0] sm:$0xff]
        %v263 = vld [vmem:[%s178 + $0x1c8] sm:$0xff]
        %v264 = vld [vmem:[%s178 + $0x1d0] sm:$0xff]
        %v265 = vld [vmem:[%s178 + $0x1d8] sm:$0xff]
        %v266 = vld [vmem:[%s178 + $0x1e0] sm:$0xff]
        %v267 = vld [vmem:[%s178 + $0x1e8] sm:$0xff]
        %v268 = vld [vmem:[%s178 + $0x1f0] sm:$0xff]
        %v269 = vld [vmem:[%s178 + $0x1f8] sm:$0xff]
        %v270 = vld [vmem:[%s178 + $0x200] sm:$0xff]
        %v271 = vld [vmem:[%s178 + $0x208] sm:$0xff]
        %v272 = vld [vmem:[%s178 + $0x210] sm:$0xff]
        %v273 = vld [vmem:[%s178 + $0x218] sm:$0xff]
        %v274 = vld [vmem:[%s178 + $0x220] sm:$0xff]
        %v275 = vld [vmem:[%s178 + $0x228] sm:$0xff]
        %v276 = vld [vmem:[%s178 + $0x230] sm:$0xff]
        %v277 = vld [vmem:[%s178 + $0x238] sm:$0xff]
        %v278 = vld [vmem:[%s178 + $0x240] sm:$0xff]
        %v279 = vld [vmem:[%s178 + $0x248] sm:$0xff]
        %v280 = vld [vmem:[%s178 + $0x250] sm:$0xff]
        %v281 = vld [vmem:[%s178 + $0x258] sm:$0xff]
        %v282 = vld [vmem:[%s178 + $0x260] sm:$0xff]
        %v283 = vld [vmem:[%s178 + $0x268] sm:$0xff]
        %v284 = vld [vmem:[%s178 + $0x270] sm:$0xff]
        %v285 = vld [vmem:[%s178 + $0x278] sm:$0xff]
        %v286 = vld [vmem:[%s178 + $0x280] sm:$0xff]
        %v287 = vld [vmem:[%s178 + $0x288] sm:$0xff]
        %v288 = vld [vmem:[%s178 + $0x290] sm:$0xff]
        %v289 = vld [vmem:[%s178 + $0x298] sm:$0xff]
        %v290 = vld [vmem:[%s178 + $0x2a0] sm:$0xff]
        %v291 = vld [vmem:[%s178 + $0x2a8] sm:$0xff]
        %v292 = vld [vmem:[%s178 + $0x2b0] sm:$0xff]
        %v293 = vld [vmem:[%s178 + $0x2b8] sm:$0xff]
        %v294 = vld [vmem:[%s178 + $0x2c0] sm:$0xff]
        %v295 = vld [vmem:[%s178 + $0x2c8] sm:$0xff]
        %v296 = vld [vmem:[%s178 + $0x2d0] sm:$0xff]
        %v297 = vld [vmem:[%s178 + $0x2d8] sm:$0xff]
        %v298 = vld [vmem:[%s178 + $0x2e0] sm:$0xff]
        %v299 = vld [vmem:[%s178 + $0x2e8] sm:$0xff]
        %v300 = vld [vmem:[%s178 + $0x2f0] sm:$0xff]
        %v301 = vld [vmem:[%s178 + $0x2f8] sm:$0xff]
        %v302 = vld [vmem:[%s178 + $0x300] sm:$0xff]
        %v303 = vld [vmem:[%s178 + $0x308] sm:$0xff]
        %v304 = vld [vmem:[%s178 + $0x310] sm:$0xff]
        %v305 = vld [vmem:[%s178 + $0x318] sm:$0xff]
        %v306 = vld [vmem:[%s178 + $0x320] sm:$0xff]
        %v307 = vld [vmem:[%s178 + $0x328] sm:$0xff]
        %v308 = vld [vmem:[%s178 + $0x330] sm:$0xff]
        %v309 = vld [vmem:[%s178 + $0x338] sm:$0xff]
        %v310 = vld [vmem:[%s178 + $0x340] sm:$0xff]
        %v311 = vld [vmem:[%s178 + $0x348] sm:$0xff]
        %v312 = vld [vmem:[%s178 + $0x350] sm:$0xff]
        %v313 = vld [vmem:[%s178 + $0x358] sm:$0xff]
        %v314 = vld [vmem:[%s178 + $0x360] sm:$0xff]
        %v315 = vld [vmem:[%s178 + $0x368] sm:$0xff]
        %v316 = vld [vmem:[%s178 + $0x370] sm:$0xff]
        %v317 = vld [vmem:[%s178 + $0x378] sm:$0xff]
        %v318 = vld [vmem:[%s178 + $0x380] sm:$0xff]
        %v319 = vld [vmem:[%s178 + $0x388] sm:$0xff]
        %v320 = vld [vmem:[%s178 + $0x390] sm:$0xff]
        %v321 = vld [vmem:[%s178 + $0x398] sm:$0xff]
        %v322 = vld [vmem:[%s178 + $0x3a0] sm:$0xff]
        %v323 = vld [vmem:[%s178 + $0x3a8] sm:$0xff]
        %v324 = vld [vmem:[%s178 + $0x3b0] sm:$0xff]
        %v325 = vld [vmem:[%s178 + $0x3b8] sm:$0xff]
        %v326 = vld [vmem:[%s178 + $0x3c0] sm:$0xff]
        %v327 = vld [vmem:[%s178 + $0x3c8] sm:$0xff]
        %v328 = vld [vmem:[%s178 + $0x3d0] sm:$0xff]
        %v329 = vld [vmem:[%s178 + $0x3d8] sm:$0xff]
        %v330 = vld [vmem:[%s178 + $0x3e0] sm:$0xff]
        %v331 = vld [vmem:[%s178 + $0x3e8] sm:$0xff]
        %v332 = vld [vmem:[%s178 + $0x3f0] sm:$0xff]
        %v333 = vld [vmem:[%s178 + $0x3f8] sm:$0xff]
        %v334 = vld [vmem:[%s178 + $0x400] sm:$0xff]
        %v335 = vld [vmem:[%s178 + $0x408] sm:$0xff]
        %v336 = vld [vmem:[%s178 + $0x410] sm:$0xff]
        %v337 = vld [vmem:[%s178 + $0x418] sm:$0xff]
        %v338 = vld [vmem:[%s178 + $0x420] sm:$0xff]
        %v339 = vld [vmem:[%s178 + $0x428] sm:$0xff]
        %v340 = vld [vmem:[%s178 + $0x430] sm:$0xff]
        %v341 = vld [vmem:[%s178 + $0x438] sm:$0xff]
        %v342 = vld [vmem:[%s178 + $0x440] sm:$0xff]
        %v343 = vld [vmem:[%s178 + $0x448] sm:$0xff]
        %v344 = vld [vmem:[%s178 + $0x450] sm:$0xff]
        %v345 = vld [vmem:[%s178 + $0x458] sm:$0xff]
        %v346 = vld [vmem:[%s178 + $0x460] sm:$0xff]
        %v347 = vld [vmem:[%s178 + $0x468] sm:$0xff]
        %v348 = vld [vmem:[%s178 + $0x470] sm:$0xff]
        %v349 = vld [vmem:[%s178 + $0x478] sm:$0xff]
        %v350 = vld [vmem:[%s178 + $0x480] sm:$0xff]
        %v351 = vld [vmem:[%s178 + $0x488] sm:$0xff]
        %v352 = vld [vmem:[%s178 + $0x490] sm:$0xff]
        %v353 = vld [vmem:[%s178 + $0x498] sm:$0xff]
        %v354 = vld [vmem:[%s178 + $0x4a0] sm:$0xff]
        %v355 = vld [vmem:[%s178 + $0x4a8] sm:$0xff]
        %v356 = vld [vmem:[%s178 + $0x4b0] sm:$0xff]
        %v357 = vld [vmem:[%s178 + $0x4b8] sm:$0xff]
        %v358 = vld [vmem:[%s178 + $0x4c0] sm:$0xff]
        %v359 = vld [vmem:[%s178 + $0x4c8] sm:$0xff]
        %v360 = vld [vmem:[%s178 + $0x4d0] sm:$0xff]
        %v361 = vld [vmem:[%s178 + $0x4d8] sm:$0xff]
        %v362 = vld [vmem:[%s178 + $0x4e0] sm:$0xff]
        %v363 = vld [vmem:[%s178 + $0x4e8] sm:$0xff]
        %v364 = vld [vmem:[%s178 + $0x4f0] sm:$0xff]
        %v365 = vld [vmem:[%s178 + $0x4f8] sm:$0xff]
        %v366 = vld [vmem:[%s178 + $0x500] sm:$0xff]
        %v367 = vld [vmem:[%s178 + $0x508] sm:$0xff]
        %v368 = vld [vmem:[%s178 + $0x510] sm:$0xff]
        %v369 = vld [vmem:[%s178 + $0x518] sm:$0xff]
        %v370 = vld [vmem:[%s178 + $0x520] sm:$0xff]
        %v371 = vld [vmem:[%s178 + $0x528] sm:$0xff]
        %v372 = vld [vmem:[%s178 + $0x530] sm:$0xff]
        %v373 = vld [vmem:[%s178 + $0x538] sm:$0xff]
        %v374 = vld [vmem:[%s178 + $0x540] sm:$0xff]
        %v375 = vld [vmem:[%s178 + $0x548] sm:$0xff]
        %v376 = vld [vmem:[%s178 + $0x550] sm:$0xff]
        %v377 = vld [vmem:[%s178 + $0x558] sm:$0xff]
        %v378 = vld [vmem:[%s178 + $0x560] sm:$0xff]
        %v379 = vld [vmem:[%s178 + $0x568] sm:$0xff]
        %v380 = vld [vmem:[%s178 + $0x570] sm:$0xff]
        %v381 = vld [vmem:[%s178 + $0x578] sm:$0xff]
        %v382 = vld [vmem:[%s178 + $0x580] sm:$0xff]
        %v383 = vld [vmem:[%s178 + $0x588] sm:$0xff]
        %v384 = vld [vmem:[%s178 + $0x590] sm:$0xff]
        %v385 = vld [vmem:[%s178 + $0x598] sm:$0xff]
        %v386 = vld [vmem:[%s178 + $0x5a0] sm:$0xff]
        %v387 = vld [vmem:[%s178 + $0x5a8] sm:$0xff]
        %v388 = vld [vmem:[%s178 + $0x5b0] sm:$0xff]
        %v389 = vld [vmem:[%s178 + $0x5b8] sm:$0xff]
        %v390 = vld [vmem:[%s178 + $0x5c0] sm:$0xff]
        %v391 = vld [vmem:[%s178 + $0x5c8] sm:$0xff]
        %v392 = vld [vmem:[%s178 + $0x5d0] sm:$0xff]
        %v393 = vld [vmem:[%s178 + $0x5d8] sm:$0xff]
        %v394 = vld [vmem:[%s178 + $0x5e0] sm:$0xff]
        %v395 = vld [vmem:[%s178 + $0x5e8] sm:$0xff]
        %v396 = vld [vmem:[%s178 + $0x5f0] sm:$0xff]
        %v397 = vld [vmem:[%s178 + $0x5f8] sm:$0xff]
        %v398 = vld [vmem:[%s178 + $0x600] sm:$0xff]
        %v399 = vld [vmem:[%s178 + $0x608] sm:$0xff]
        %v400 = vld [vmem:[%s178 + $0x610] sm:$0xff]
        %v401 = vld [vmem:[%s178 + $0x618] sm:$0xff]
        %v402 = vld [vmem:[%s178 + $0x620] sm:$0xff]
        %v403 = vld [vmem:[%s178 + $0x628] sm:$0xff]
        %v404 = vld [vmem:[%s178 + $0x630] sm:$0xff]
        %v405 = vld [vmem:[%s178 + $0x638] sm:$0xff]
        %v406 = vld [vmem:[%s178 + $0x640] sm:$0xff]
        %v407 = vld [vmem:[%s178 + $0x648] sm:$0xff]
        %v408 = vld [vmem:[%s178 + $0x650] sm:$0xff]
        %v409 = vld [vmem:[%s178 + $0x658] sm:$0xff]
        %v410 = vld [vmem:[%s178 + $0x660] sm:$0xff]
        %v411 = vld [vmem:[%s178 + $0x668] sm:$0xff]
        %v412 = vld [vmem:[%s178 + $0x670] sm:$0xff]
        %v413 = vld [vmem:[%s178 + $0x678] sm:$0xff]
        %v414 = vld [vmem:[%s178 + $0x680] sm:$0xff]
        %v415 = vld [vmem:[%s178 + $0x688] sm:$0xff]
        %v416 = vld [vmem:[%s178 + $0x690] sm:$0xff]
        %v417 = vld [vmem:[%s178 + $0x698] sm:$0xff]
        %v418 = vld [vmem:[%s178 + $0x6a0] sm:$0xff]
        %v419 = vld [vmem:[%s178 + $0x6a8] sm:$0xff]
        %v420 = vld [vmem:[%s178 + $0x6b0] sm:$0xff]
        %v421 = vld [vmem:[%s178 + $0x6b8] sm:$0xff]
        %v422 = vld [vmem:[%s178 + $0x6c0] sm:$0xff]
        %v423 = vld [vmem:[%s178 + $0x6c8] sm:$0xff]
        %v424 = vld [vmem:[%s178 + $0x6d0] sm:$0xff]
        %v425 = vld [vmem:[%s178 + $0x6d8] sm:$0xff]
        %v426 = vld [vmem:[%s178 + $0x6e0] sm:$0xff]
        %v427 = vld [vmem:[%s178 + $0x6e8] sm:$0xff]
        %v428 = vld [vmem:[%s178 + $0x6f0] sm:$0xff]
        %v429 = vld [vmem:[%s178 + $0x6f8] sm:$0xff]
        %v430 = vld [vmem:[%s178 + $0x700] sm:$0xff]
        %v431 = vld [vmem:[%s178 + $0x708] sm:$0xff]
        %v432 = vld [vmem:[%s178 + $0x710] sm:$0xff]
        %v433 = vld [vmem:[%s178 + $0x718] sm:$0xff]
        %v434 = vld [vmem:[%s178 + $0x720] sm:$0xff]
        %v435 = vld [vmem:[%s178 + $0x728] sm:$0xff]
        %v436 = vld [vmem:[%s178 + $0x730] sm:$0xff]
        %v437 = vld [vmem:[%s178 + $0x738] sm:$0xff]
        %v438 = vld [vmem:[%s178 + $0x740] sm:$0xff]
        %v439 = vld [vmem:[%s178 + $0x748] sm:$0xff]
        %v440 = vld [vmem:[%s178 + $0x750] sm:$0xff]
        %v441 = vld [vmem:[%s178 + $0x758] sm:$0xff]
        %v442 = vld [vmem:[%s178 + $0x760] sm:$0xff]
        %v443 = vld [vmem:[%s178 + $0x768] sm:$0xff]
        %v444 = vld [vmem:[%s178 + $0x770] sm:$0xff]
        %v445 = vld [vmem:[%s178 + $0x778] sm:$0xff]
        %v446 = vld [vmem:[%s178 + $0x780] sm:$0xff]
        %v447 = vld [vmem:[%s178 + $0x788] sm:$0xff]
        %v448 = vld [vmem:[%s178 + $0x790] sm:$0xff]
        %v449 = vld [vmem:[%s178 + $0x798] sm:$0xff]
        %v450 = vld [vmem:[%s178 + $0x7a0] sm:$0xff]
        %v451 = vld [vmem:[%s178 + $0x7a8] sm:$0xff]
        %v452 = vld [vmem:[%s178 + $0x7b0] sm:$0xff]
        %v453 = vld [vmem:[%s178 + $0x7b8] sm:$0xff]
        %v454 = vld [vmem:[%s178 + $0x7c0] sm:$0xff]
        %v455 = vld [vmem:[%s178 + $0x7c8] sm:$0xff]
        %v456 = vld [vmem:[%s178 + $0x7d0] sm:$0xff]
        %v457 = vld [vmem:[%s178 + $0x7d8] sm:$0xff]
        %v458 = vld [vmem:[%s178 + $0x7e0] sm:$0xff]
        %v459 = vld [vmem:[%s178 + $0x7e8] sm:$0xff]
        %v460 = vld [vmem:[%s178 + $0x7f0] sm:$0xff]
        %v461 = vld [vmem:[%s178 + $0x7f8] sm:$0xff]
        %v462 = vld [vmem:[%s178 + $0x800] sm:$0xff]
        %v463 = vld [vmem:[%s178 + $0x808] sm:$0xff]
        %v464 = vld [vmem:[%s178 + $0x810] sm:$0xff]
        %v465 = vld [vmem:[%s178 + $0x818] sm:$0xff]
        %v466 = vld [vmem:[%s178 + $0x820] sm:$0xff]
        %v467 = vld [vmem:[%s178 + $0x828] sm:$0xff]
        %v468 = vld [vmem:[%s178 + $0x830] sm:$0xff]
        %v469 = vld [vmem:[%s178 + $0x838] sm:$0xff]
        %v470 = vld [vmem:[%s178 + $0x840] sm:$0xff]
        %v471 = vld [vmem:[%s178 + $0x848] sm:$0xff]
        %v472 = vld [vmem:[%s178 + $0x850] sm:$0xff]
        %v473 = vld [vmem:[%s178 + $0x858] sm:$0xff]
        %v474 = vld [vmem:[%s178 + $0x860] sm:$0xff]
        %v475 = vld [vmem:[%s178 + $0x868] sm:$0xff]
        %v476 = vld [vmem:[%s178 + $0x870] sm:$0xff]
        %v477 = vld [vmem:[%s178 + $0x878] sm:$0xff]
        %v478 = vld [vmem:[%s178 + $0x880] sm:$0xff]
        %v479 = vld [vmem:[%s178 + $0x888] sm:$0xff]
        %v480 = vld [vmem:[%s178 + $0x890] sm:$0xff]
        %v481 = vld [vmem:[%s178 + $0x898] sm:$0xff]
        %v482 = vld [vmem:[%s178 + $0x8a0] sm:$0xff]
        %v483 = vld [vmem:[%s178 + $0x8a8] sm:$0xff]
        %v484 = vld [vmem:[%s178 + $0x8b0] sm:$0xff]
        %v485 = vld [vmem:[%s178 + $0x8b8] sm:$0xff]
        %v486 = vld [vmem:[%s178 + $0x8c0] sm:$0xff]
        %v487 = vld [vmem:[%s178 + $0x8c8] sm:$0xff]
        %v488 = vld [vmem:[%s178 + $0x8d0] sm:$0xff]
        %v489 = vld [vmem:[%s178 + $0x8d8] sm:$0xff]
        %v490 = vld [vmem:[%s178 + $0x8e0] sm:$0xff]
        %v491 = vld [vmem:[%s178 + $0x8e8] sm:$0xff]
        %v492 = vld [vmem:[%s178 + $0x8f0] sm:$0xff]
        %v493 = vld [vmem:[%s178 + $0x8f8] sm:$0xff]
        %v494 = vld [vmem:[%s178 + $0x900] sm:$0xff]
        %v495 = vld [vmem:[%s178 + $0x908] sm:$0xff]
        %v496 = vld [vmem:[%s178 + $0x910] sm:$0xff]
        %v497 = vld [vmem:[%s178 + $0x918] sm:$0xff]
        %v498 = vld [vmem:[%s178 + $0x920] sm:$0xff]
        %v499 = vld [vmem:[%s178 + $0x928] sm:$0xff]
        %v500 = vld [vmem:[%s178 + $0x930] sm:$0xff]
        %v501 = vld [vmem:[%s178 + $0x938] sm:$0xff]
        %v502 = vld [vmem:[%s178 + $0x940] sm:$0xff]
        %v503 = vld [vmem:[%s178 + $0x948] sm:$0xff]
        %v504 = vld [vmem:[%s178 + $0x950] sm:$0xff]
        %v505 = vld [vmem:[%s178 + $0x958] sm:$0xff]
        %v506 = vld [vmem:[%s178 + $0x960] sm:$0xff]
        %v507 = vld [vmem:[%s178 + $0x968] sm:$0xff]
        %v508 = vld [vmem:[%s178 + $0x970] sm:$0xff]
        %v509 = vld [vmem:[%s178 + $0x978] sm:$0xff]
        %v510 = vld [vmem:[%s178 + $0x980] sm:$0xff]
        %v511 = vld [vmem:[%s178 + $0x988] sm:$0xff]
        %v512 = vld [vmem:[%s178 + $0x990] sm:$0xff]
        %v513 = vld [vmem:[%s178 + $0x998] sm:$0xff]
        %v514 = vld [vmem:[%s178 + $0x9a0] sm:$0xff]
        %v515 = vld [vmem:[%s178 + $0x9a8] sm:$0xff]
        %v516 = vld [vmem:[%s178 + $0x9b0] sm:$0xff]
        %v517 = vld [vmem:[%s178 + $0x9b8] sm:$0xff]
        %v518 = vld [vmem:[%s178 + $0x9c0] sm:$0xff]
        %v519 = vld [vmem:[%s178 + $0x9c8] sm:$0xff]
        %v520 = vld [vmem:[%s178 + $0x9d0] sm:$0xff]
        %v521 = vld [vmem:[%s178 + $0x9d8] sm:$0xff]
        %v522 = vld [vmem:[%s178 + $0x9e0] sm:$0xff]
        %v523 = vld [vmem:[%s178 + $0x9e8] sm:$0xff]
        %v524 = vld [vmem:[%s178 + $0x9f0] sm:$0xff]
        %v525 = vld [vmem:[%s178 + $0x9f8] sm:$0xff]
        %v526 = vld [vmem:[#allocation5] sm:$0xff]
        %v527 = vld [vmem:[#allocation5 + $0x8] sm:$0xff]
        %v528 = vld [vmem:[#allocation5 + $0x10] sm:$0xff]
        %v529 = vld [vmem:[#allocation5 + $0x18] sm:$0xff]
        %v530 = vld [vmem:[#allocation5 + $0x20] sm:$0xff]
        %v531 = vld [vmem:[#allocation5 + $0x28] sm:$0xff]
        %v532 = vld [vmem:[#allocation5 + $0x30] sm:$0xff]
        %v533 = vld [vmem:[#allocation5 + $0x38] sm:$0xff]
        %v534 = vld [vmem:[#allocation5 + $0x40] sm:$0xff]
        %v535 = vld [vmem:[#allocation5 + $0x48] sm:$0xff]
        %v536 = vld [vmem:[#allocation5 + $0x50] sm:$0xff]
        %v537 = vld [vmem:[#allocation5 + $0x58] sm:$0xff]
        %v538 = vld [vmem:[#allocation5 + $0x60] sm:$0xff]
        %v539 = vld [vmem:[#allocation5 + $0x68] sm:$0xff]
        %v540 = vld [vmem:[#allocation5 + $0x70] sm:$0xff]
        %v541 = vld [vmem:[#allocation5 + $0x78] sm:$0xff]
        %v542 = vld [vmem:[#allocation5 + $0x80] sm:$0xff]
        %v543 = vld [vmem:[#allocation5 + $0x88] sm:$0xff]
        %v544 = vld [vmem:[#allocation5 + $0x90] sm:$0xff]
        %v545 = vld [vmem:[#allocation5 + $0x98] sm:$0xff]
        %v546 = vld [vmem:[#allocation5 + $0xa0] sm:$0xff]
        %v547 = vld [vmem:[#allocation5 + $0xa8] sm:$0xff]
        %v548 = vld [vmem:[#allocation5 + $0xb0] sm:$0xff]
        %v549 = vld [vmem:[#allocation5 + $0xb8] sm:$0xff]
        %v550 = vld [vmem:[#allocation5 + $0xc0] sm:$0xff]
        %v551 = vld [vmem:[#allocation5 + $0xc8] sm:$0xff]
        %v552 = vld [vmem:[#allocation5 + $0xd0] sm:$0xff]
        %v553 = vld [vmem:[#allocation5 + $0xd8] sm:$0xff]
        %v554 = vld [vmem:[#allocation5 + $0xe0] sm:$0xff]
        %v555 = vld [vmem:[#allocation5 + $0xe8] sm:$0xff]
        %v556 = vld [vmem:[#allocation5 + $0xf0] sm:$0xff]
        %v557 = vld [vmem:[#allocation5 + $0xf8] sm:$0xff]
        %v558 = vld [vmem:[#allocation5 + $0x100] sm:$0xff]
        %v559 = vld [vmem:[#allocation5 + $0x108] sm:$0xff]
        %v560 = vld [vmem:[#allocation5 + $0x110] sm:$0xff]
        %v561 = vld [vmem:[#allocation5 + $0x118] sm:$0xff]
        %v562 = vld [vmem:[#allocation5 + $0x120] sm:$0xff]
        %v563 = vld [vmem:[#allocation5 + $0x128] sm:$0xff]
        %v564 = vld [vmem:[#allocation5 + $0x130] sm:$0xff]
        %v565 = vld [vmem:[#allocation5 + $0x138] sm:$0xff]
        %v566 = vld [vmem:[#allocation5 + $0x140] sm:$0xff]
        %v567 = vld [vmem:[#allocation5 + $0x148] sm:$0xff]
        %v568 = vld [vmem:[#allocation5 + $0x150] sm:$0xff]
        %v569 = vld [vmem:[#allocation5 + $0x158] sm:$0xff]
        %v570 = vld [vmem:[#allocation5 + $0x160] sm:$0xff]
        %v571 = vld [vmem:[#allocation5 + $0x168] sm:$0xff]
        %v572 = vld [vmem:[#allocation5 + $0x170] sm:$0xff]
        %v573 = vld [vmem:[#allocation5 + $0x178] sm:$0xff]
        %v574 = vld [vmem:[#allocation5 + $0x180] sm:$0xff]
        %v575 = vld [vmem:[#allocation5 + $0x188] sm:$0xff]
        %v576 = vld [vmem:[#allocation5 + $0x190] sm:$0xff]
        %v577 = vld [vmem:[#allocation5 + $0x198] sm:$0xff]
        %v578 = vld [vmem:[#allocation5 + $0x1a0] sm:$0xff]
        %v579 = vld [vmem:[#allocation5 + $0x1a8] sm:$0xff]
        %v580 = vld [vmem:[#allocation5 + $0x1b0] sm:$0xff]
        %v581 = vld [vmem:[#allocation5 + $0x1b8] sm:$0xff]
        %v582 = vld [vmem:[#allocation5 + $0x1c0] sm:$0xff]
        %v583 = vld [vmem:[#allocation5 + $0x1c8] sm:$0xff]
        %v584 = vld [vmem:[#allocation5 + $0x1d0] sm:$0xff]
        %v585 = vld [vmem:[#allocation5 + $0x1d8] sm:$0xff]
        %v586 = vld [vmem:[#allocation5 + $0x1e0] sm:$0xff]
        %v587 = vld [vmem:[#allocation5 + $0x1e8] sm:$0xff]
        %v588 = vld [vmem:[#allocation5 + $0x1f0] sm:$0xff]
        %v589 = vld [vmem:[#allocation5 + $0x1f8] sm:$0xff]
        %v590 = vld [vmem:[#allocation5 + $0x200] sm:$0xff]
        %v591 = vld [vmem:[#allocation5 + $0x208] sm:$0xff]
        %v592 = vld [vmem:[#allocation5 + $0x210] sm:$0xff]
        %v593 = vld [vmem:[#allocation5 + $0x218] sm:$0xff]
        %v594 = vld [vmem:[#allocation5 + $0x220] sm:$0xff]
        %v595 = vld [vmem:[#allocation5 + $0x228] sm:$0xff]
        %v596 = vld [vmem:[#allocation5 + $0x230] sm:$0xff]
        %v597 = vld [vmem:[#allocation5 + $0x238] sm:$0xff]
        %v598 = vld [vmem:[#allocation5 + $0x240] sm:$0xff]
        %v599 = vld [vmem:[#allocation5 + $0x248] sm:$0xff]
        %v600 = vld [vmem:[#allocation5 + $0x250] sm:$0xff]
        %v601 = vld [vmem:[#allocation5 + $0x258] sm:$0xff]
        %v602 = vld [vmem:[#allocation5 + $0x260] sm:$0xff]
        %v603 = vld [vmem:[#allocation5 + $0x268] sm:$0xff]
        %v604 = vld [vmem:[#allocation5 + $0x270] sm:$0xff]
        %v605 = vld [vmem:[#allocation5 + $0x278] sm:$0xff]
        %v606 = vld [vmem:[#allocation5 + $0x280] sm:$0xff]
        %v607 = vld [vmem:[#allocation5 + $0x288] sm:$0xff]
        %v608 = vld [vmem:[#allocation5 + $0x290] sm:$0xff]
        %v609 = vld [vmem:[#allocation5 + $0x298] sm:$0xff]
        %v610 = vld [vmem:[#allocation5 + $0x2a0] sm:$0xff]
        %v611 = vld [vmem:[#allocation5 + $0x2a8] sm:$0xff]
        %v612 = vld [vmem:[#allocation5 + $0x2b0] sm:$0xff]
        %v613 = vld [vmem:[#allocation5 + $0x2b8] sm:$0xff]
        %v614 = vld [vmem:[#allocation5 + $0x2c0] sm:$0xff]
        %v615 = vld [vmem:[#allocation5 + $0x2c8] sm:$0xff]
        %v616 = vld [vmem:[#allocation5 + $0x2d0] sm:$0xff]
        %v617 = vld [vmem:[#allocation5 + $0x2d8] sm:$0xff]
        %v618 = vld [vmem:[#allocation5 + $0x2e0] sm:$0xff]
        %v619 = vld [vmem:[#allocation5 + $0x2e8] sm:$0xff]
        %v620 = vld [vmem:[#allocation5 + $0x2f0] sm:$0xff]
        %v621 = vld [vmem:[#allocation5 + $0x2f8] sm:$0xff]
        %v622 = vld [vmem:[#allocation5 + $0x300] sm:$0xff]
        %v623 = vld [vmem:[#allocation5 + $0x308] sm:$0xff]
        %v624 = vld [vmem:[#allocation5 + $0x310] sm:$0xff]
        %v625 = vld [vmem:[#allocation5 + $0x318] sm:$0xff]
        %v626 = vld [vmem:[#allocation5 + $0x320] sm:$0xff]
        %v627 = vld [vmem:[#allocation5 + $0x328] sm:$0xff]
        %v628 = vld [vmem:[#allocation5 + $0x330] sm:$0xff]
        %v629 = vld [vmem:[#allocation5 + $0x338] sm:$0xff]
        %v630 = vld [vmem:[#allocation5 + $0x340] sm:$0xff]
        %v631 = vld [vmem:[#allocation5 + $0x348] sm:$0xff]
        %v632 = vld [vmem:[#allocation5 + $0x350] sm:$0xff]
        %v633 = vld [vmem:[#allocation5 + $0x358] sm:$0xff]
        %v634 = vld [vmem:[#allocation5 + $0x360] sm:$0xff]
        %v635 = vld [vmem:[#allocation5 + $0x368] sm:$0xff]
        %v636 = vld [vmem:[#allocation5 + $0x370] sm:$0xff]
        %v637 = vld [vmem:[#allocation5 + $0x378] sm:$0xff]
        %v638 = vld [vmem:[#allocation5 + $0x380] sm:$0xff]
        %v639 = vld [vmem:[#allocation5 + $0x388] sm:$0xff]
        %v640 = vld [vmem:[#allocation5 + $0x390] sm:$0xff]
        %v641 = vld [vmem:[#allocation5 + $0x398] sm:$0xff]
        %v642 = vld [vmem:[#allocation5 + $0x3a0] sm:$0xff]
        %v643 = vld [vmem:[#allocation5 + $0x3a8] sm:$0xff]
        %v644 = vld [vmem:[#allocation5 + $0x3b0] sm:$0xff]
        %v645 = vld [vmem:[#allocation5 + $0x3b8] sm:$0xff]
        %v646 = vld [vmem:[#allocation5 + $0x3c0] sm:$0xff]
        %v647 = vld [vmem:[#allocation5 + $0x3c8] sm:$0xff]
        %v648 = vld [vmem:[#allocation5 + $0x3d0] sm:$0xff]
        %v649 = vld [vmem:[#allocation5 + $0x3d8] sm:$0xff]
        %v650 = vld [vmem:[#allocation5 + $0x3e0] sm:$0xff]
        %v651 = vld [vmem:[#allocation5 + $0x3e8] sm:$0xff]
        %v652 = vld [vmem:[#allocation5 + $0x3f0] sm:$0xff]
        %v653 = vld [vmem:[#allocation5 + $0x3f8] sm:$0xff]
        %v654 = vld [vmem:[#allocation5 + $0x400] sm:$0xff]
        %v655 = vld [vmem:[#allocation5 + $0x408] sm:$0xff]
        %v656 = vld [vmem:[#allocation5 + $0x410] sm:$0xff]
        %v657 = vld [vmem:[#allocation5 + $0x418] sm:$0xff]
        %v658 = vld [vmem:[#allocation5 + $0x420] sm:$0xff]
        %v659 = vld [vmem:[#allocation5 + $0x428] sm:$0xff]
        %v660 = vld [vmem:[#allocation5 + $0x430] sm:$0xff]
        %v661 = vld [vmem:[#allocation5 + $0x438] sm:$0xff]
        %v662 = vld [vmem:[#allocation5 + $0x440] sm:$0xff]
        %v663 = vld [vmem:[#allocation5 + $0x448] sm:$0xff]
        %v664 = vld [vmem:[#allocation5 + $0x450] sm:$0xff]
        %v665 = vld [vmem:[#allocation5 + $0x458] sm:$0xff]
        %v666 = vld [vmem:[#allocation5 + $0x460] sm:$0xff]
        %v667 = vld [vmem:[#allocation5 + $0x468] sm:$0xff]
        %v668 = vld [vmem:[#allocation5 + $0x470] sm:$0xff]
        %v669 = vld [vmem:[#allocation5 + $0x478] sm:$0xff]
        %v670 = vld [vmem:[#allocation5 + $0x480] sm:$0xff]
        %v671 = vld [vmem:[#allocation5 + $0x488] sm:$0xff]
        %v672 = vld [vmem:[#allocation5 + $0x490] sm:$0xff]
        %v673 = vld [vmem:[#allocation5 + $0x498] sm:$0xff]
        %v674 = vld [vmem:[#allocation5 + $0x4a0] sm:$0xff]
        %v675 = vld [vmem:[#allocation5 + $0x4a8] sm:$0xff]
        %v676 = vld [vmem:[#allocation5 + $0x4b0] sm:$0xff]
        %v677 = vld [vmem:[#allocation5 + $0x4b8] sm:$0xff]
        %v678 = vld [vmem:[#allocation5 + $0x4c0] sm:$0xff]
        %v679 = vld [vmem:[#allocation5 + $0x4c8] sm:$0xff]
        %v680 = vld [vmem:[#allocation5 + $0x4d0] sm:$0xff]
        %v681 = vld [vmem:[#allocation5 + $0x4d8] sm:$0xff]
        %v682 = vld [vmem:[#allocation5 + $0x4e0] sm:$0xff]
        %v683 = vld [vmem:[#allocation5 + $0x4e8] sm:$0xff]
        %v684 = vld [vmem:[#allocation5 + $0x4f0] sm:$0xff]
        %v685 = vld [vmem:[#allocation5 + $0x4f8] sm:$0xff]
        %v686 = vld [vmem:[#allocation5 + $0x500] sm:$0xff]
        %v687 = vld [vmem:[#allocation5 + $0x508] sm:$0xff]
        %v688 = vld [vmem:[#allocation5 + $0x510] sm:$0xff]
        %v689 = vld [vmem:[#allocation5 + $0x518] sm:$0xff]
        %v690 = vld [vmem:[#allocation5 + $0x520] sm:$0xff]
        %v691 = vld [vmem:[#allocation5 + $0x528] sm:$0xff]
        %v692 = vld [vmem:[#allocation5 + $0x530] sm:$0xff]
        %v693 = vld [vmem:[#allocation5 + $0x538] sm:$0xff]
        %v694 = vld [vmem:[#allocation5 + $0x540] sm:$0xff]
        %v695 = vld [vmem:[#allocation5 + $0x548] sm:$0xff]
        %v696 = vld [vmem:[#allocation5 + $0x550] sm:$0xff]
        %v697 = vld [vmem:[#allocation5 + $0x558] sm:$0xff]
        %v698 = vld [vmem:[#allocation5 + $0x560] sm:$0xff]
        %v699 = vld [vmem:[#allocation5 + $0x568] sm:$0xff]
        %v700 = vld [vmem:[#allocation5 + $0x570] sm:$0xff]
        %v701 = vld [vmem:[#allocation5 + $0x578] sm:$0xff]
        %v702 = vld [vmem:[#allocation5 + $0x580] sm:$0xff]
        %v703 = vld [vmem:[#allocation5 + $0x588] sm:$0xff]
        %v704 = vld [vmem:[#allocation5 + $0x590] sm:$0xff]
        %v705 = vld [vmem:[#allocation5 + $0x598] sm:$0xff]
        %v706 = vld [vmem:[#allocation5 + $0x5a0] sm:$0xff]
        %v707 = vld [vmem:[#allocation5 + $0x5a8] sm:$0xff]
        %v708 = vld [vmem:[#allocation5 + $0x5b0] sm:$0xff]
        %v709 = vld [vmem:[#allocation5 + $0x5b8] sm:$0xff]
        %v710 = vld [vmem:[#allocation5 + $0x5c0] sm:$0xff]
        %v711 = vld [vmem:[#allocation5 + $0x5c8] sm:$0xff]
        %v712 = vld [vmem:[#allocation5 + $0x5d0] sm:$0xff]
        %v713 = vld [vmem:[#allocation5 + $0x5d8] sm:$0xff]
        %v714 = vld [vmem:[#allocation5 + $0x5e0] sm:$0xff]
        %v715 = vld [vmem:[#allocation5 + $0x5e8] sm:$0xff]
        %v716 = vld [vmem:[#allocation5 + $0x5f0] sm:$0xff]
        %v717 = vld [vmem:[#allocation5 + $0x5f8] sm:$0xff]
        %v718 = vld [vmem:[#allocation5 + $0x600] sm:$0xff]
        %v719 = vld [vmem:[#allocation5 + $0x608] sm:$0xff]
        %v720 = vld [vmem:[#allocation5 + $0x610] sm:$0xff]
        %v721 = vld [vmem:[#allocation5 + $0x618] sm:$0xff]
        %v722 = vld [vmem:[#allocation5 + $0x620] sm:$0xff]
        %v723 = vld [vmem:[#allocation5 + $0x628] sm:$0xff]
        %v724 = vld [vmem:[#allocation5 + $0x630] sm:$0xff]
        %v725 = vld [vmem:[#allocation5 + $0x638] sm:$0xff]
        %v726 = vld [vmem:[#allocation5 + $0x640] sm:$0xff]
        %v727 = vld [vmem:[#allocation5 + $0x648] sm:$0xff]
        %v728 = vld [vmem:[#allocation5 + $0x650] sm:$0xff]
        %v729 = vld [vmem:[#allocation5 + $0x658] sm:$0xff]
        %v730 = vld [vmem:[#allocation5 + $0x660] sm:$0xff]
        %v731 = vld [vmem:[#allocation5 + $0x668] sm:$0xff]
        %v732 = vld [vmem:[#allocation5 + $0x670] sm:$0xff]
        %v733 = vld [vmem:[#allocation5 + $0x678] sm:$0xff]
        %v734 = vld [vmem:[#allocation5 + $0x680] sm:$0xff]
        %v735 = vld [vmem:[#allocation5 + $0x688] sm:$0xff]
        %v736 = vld [vmem:[#allocation5 + $0x690] sm:$0xff]
        %v737 = vld [vmem:[#allocation5 + $0x698] sm:$0xff]
        %v738 = vld [vmem:[#allocation5 + $0x6a0] sm:$0xff]
        %v739 = vld [vmem:[#allocation5 + $0x6a8] sm:$0xff]
        %v740 = vld [vmem:[#allocation5 + $0x6b0] sm:$0xff]
        %v741 = vld [vmem:[#allocation5 + $0x6b8] sm:$0xff]
        %v742 = vld [vmem:[#allocation5 + $0x6c0] sm:$0xff]
        %v743 = vld [vmem:[#allocation5 + $0x6c8] sm:$0xff]
        %v744 = vld [vmem:[#allocation5 + $0x6d0] sm:$0xff]
        %v745 = vld [vmem:[#allocation5 + $0x6d8] sm:$0xff]
        %v746 = vld [vmem:[#allocation5 + $0x6e0] sm:$0xff]
        %v747 = vld [vmem:[#allocation5 + $0x6e8] sm:$0xff]
        %v748 = vld [vmem:[#allocation5 + $0x6f0] sm:$0xff]
        %v749 = vld [vmem:[#allocation5 + $0x6f8] sm:$0xff]
        %v750 = vld [vmem:[#allocation5 + $0x700] sm:$0xff]
        %v751 = vld [vmem:[#allocation5 + $0x708] sm:$0xff]
        %v752 = vld [vmem:[#allocation5 + $0x710] sm:$0xff]
        %v753 = vld [vmem:[#allocation5 + $0x718] sm:$0xff]
        %v754 = vld [vmem:[#allocation5 + $0x720] sm:$0xff]
        %v755 = vld [vmem:[#allocation5 + $0x728] sm:$0xff]
        %v756 = vld [vmem:[#allocation5 + $0x730] sm:$0xff]
        %v757 = vld [vmem:[#allocation5 + $0x738] sm:$0xff]
        %v758 = vld [vmem:[#allocation5 + $0x740] sm:$0xff]
        %v759 = vld [vmem:[#allocation5 + $0x748] sm:$0xff]
        %v760 = vld [vmem:[#allocation5 + $0x750] sm:$0xff]
        %v761 = vld [vmem:[#allocation5 + $0x758] sm:$0xff]
        %v762 = vld [vmem:[#allocation5 + $0x760] sm:$0xff]
        %v763 = vld [vmem:[#allocation5 + $0x768] sm:$0xff]
        %v764 = vld [vmem:[#allocation5 + $0x770] sm:$0xff]
        %v765 = vld [vmem:[#allocation5 + $0x778] sm:$0xff]
        %v766 = vld [vmem:[#allocation5 + $0x780] sm:$0xff]
        %v767 = vld [vmem:[#allocation5 + $0x788] sm:$0xff]
        %v768 = vld [vmem:[#allocation5 + $0x790] sm:$0xff]
        %v769 = vld [vmem:[#allocation5 + $0x798] sm:$0xff]
        %v770 = vld [vmem:[#allocation5 + $0x7a0] sm:$0xff]
        %v771 = vld [vmem:[#allocation5 + $0x7a8] sm:$0xff]
        %v772 = vld [vmem:[#allocation5 + $0x7b0] sm:$0xff]
        %v773 = vld [vmem:[#allocation5 + $0x7b8] sm:$0xff]
        %v774 = vld [vmem:[#allocation5 + $0x7c0] sm:$0xff]
        %v775 = vld [vmem:[#allocation5 + $0x7c8] sm:$0xff]
        %v776 = vld [vmem:[#allocation5 + $0x7d0] sm:$0xff]
        %v777 = vld [vmem:[#allocation5 + $0x7d8] sm:$0xff]
        %v778 = vld [vmem:[#allocation5 + $0x7e0] sm:$0xff]
        %v779 = vld [vmem:[#allocation5 + $0x7e8] sm:$0xff]
        %v780 = vld [vmem:[#allocation5 + $0x7f0] sm:$0xff]
        %v781 = vld [vmem:[#allocation5 + $0x7f8] sm:$0xff]
        %v782 = vld [vmem:[#allocation5 + $0x800] sm:$0xff]
        %v783 = vld [vmem:[#allocation5 + $0x808] sm:$0xff]
        %v784 = vld [vmem:[#allocation5 + $0x810] sm:$0xff]
        %v785 = vld [vmem:[#allocation5 + $0x818] sm:$0xff]
        %v786 = vld [vmem:[#allocation5 + $0x820] sm:$0xff]
        %v787 = vld [vmem:[#allocation5 + $0x828] sm:$0xff]
        %v788 = vld [vmem:[#allocation5 + $0x830] sm:$0xff]
        %v789 = vld [vmem:[#allocation5 + $0x838] sm:$0xff]
        %v790 = vld [vmem:[#allocation5 + $0x840] sm:$0xff]
        %v791 = vld [vmem:[#allocation5 + $0x848] sm:$0xff]
        %v792 = vld [vmem:[#allocation5 + $0x850] sm:$0xff]
        %v793 = vld [vmem:[#allocation5 + $0x858] sm:$0xff]
        %v794 = vld [vmem:[#allocation5 + $0x860] sm:$0xff]
        %v795 = vld [vmem:[#allocation5 + $0x868] sm:$0xff]
        %v796 = vld [vmem:[#allocation5 + $0x870] sm:$0xff]
        %v797 = vld [vmem:[#allocation5 + $0x878] sm:$0xff]
        %v798 = vld [vmem:[#allocation5 + $0x880] sm:$0xff]
        %v799 = vld [vmem:[#allocation5 + $0x888] sm:$0xff]
        %v800 = vld [vmem:[#allocation5 + $0x890] sm:$0xff]
        %v801 = vld [vmem:[#allocation5 + $0x898] sm:$0xff]
        %v802 = vld [vmem:[#allocation5 + $0x8a0] sm:$0xff]
        %v803 = vld [vmem:[#allocation5 + $0x8a8] sm:$0xff]
        %v804 = vld [vmem:[#allocation5 + $0x8b0] sm:$0xff]
        %v805 = vld [vmem:[#allocation5 + $0x8b8] sm:$0xff]
        %v806 = vld [vmem:[#allocation5 + $0x8c0] sm:$0xff]
        %v807 = vld [vmem:[#allocation5 + $0x8c8] sm:$0xff]
        %v808 = vld [vmem:[#allocation5 + $0x8d0] sm:$0xff]
        %v809 = vld [vmem:[#allocation5 + $0x8d8] sm:$0xff]
        %v810 = vld [vmem:[#allocation5 + $0x8e0] sm:$0xff]
        %v811 = vld [vmem:[#allocation5 + $0x8e8] sm:$0xff]
        %v812 = vld [vmem:[#allocation5 + $0x8f0] sm:$0xff]
        %v813 = vld [vmem:[#allocation5 + $0x8f8] sm:$0xff]
        %v814 = vld [vmem:[#allocation5 + $0x900] sm:$0xff]
        %v815 = vld [vmem:[#allocation5 + $0x908] sm:$0xff]
        %v816 = vld [vmem:[#allocation5 + $0x910] sm:$0xff]
        %v817 = vld [vmem:[#allocation5 + $0x918] sm:$0xff]
        %v818 = vld [vmem:[#allocation5 + $0x920] sm:$0xff]
        %v819 = vld [vmem:[#allocation5 + $0x928] sm:$0xff]
        %v820 = vld [vmem:[#allocation5 + $0x930] sm:$0xff]
        %v821 = vld [vmem:[#allocation5 + $0x938] sm:$0xff]
        %v822 = vld [vmem:[#allocation5 + $0x940] sm:$0xff]
        %v823 = vld [vmem:[#allocation5 + $0x948] sm:$0xff]
        %v824 = vld [vmem:[#allocation5 + $0x950] sm:$0xff]
        %v825 = vld [vmem:[#allocation5 + $0x958] sm:$0xff]
        %v826 = vld [vmem:[#allocation5 + $0x960] sm:$0xff]
        %v827 = vld [vmem:[#allocation5 + $0x968] sm:$0xff]
        %v828 = vld [vmem:[#allocation5 + $0x970] sm:$0xff]
        %v829 = vld [vmem:[#allocation5 + $0x978] sm:$0xff]
        %v830 = vld [vmem:[#allocation5 + $0x980] sm:$0xff]
        %v831 = vld [vmem:[#allocation5 + $0x988] sm:$0xff]
        %v832 = vld [vmem:[#allocation5 + $0x990] sm:$0xff]
        %v833 = vld [vmem:[#allocation5 + $0x998] sm:$0xff]
        %v834 = vld [vmem:[#allocation5 + $0x9a0] sm:$0xff]
        %v835 = vld [vmem:[#allocation5 + $0x9a8] sm:$0xff]
        %v836 = vld [vmem:[#allocation5 + $0x9b0] sm:$0xff]
        %v837 = vld [vmem:[#allocation5 + $0x9b8] sm:$0xff]
        %v838 = vld [vmem:[#allocation5 + $0x9c0] sm:$0xff]
        %v839 = vld [vmem:[#allocation5 + $0x9c8] sm:$0xff]
        %v840 = vld [vmem:[#allocation5 + $0x9d0] sm:$0xff]
        %v841 = vld [vmem:[#allocation5 + $0x9d8] sm:$0xff]
        %v842 = vld [vmem:[#allocation5 + $0x9e0] sm:$0xff]
        %v843 = vld [vmem:[#allocation5 + $0x9e8] sm:$0xff]
        %v844 = vld [vmem:[#allocation5 + $0x9f0] sm:$0xff]
        %v845 = vld [vmem:[#allocation5 + $0x9f8] sm:$0xff]
        %v846 = vadd.f32 %v206, %v526
        %v847 = vadd.f32 %v207, %v527
        %v848 = vadd.f32 %v208, %v528
        %v849 = vadd.f32 %v209, %v529
        %v850 = vadd.f32 %v210, %v530
        %v851 = vadd.f32 %v211, %v531
        %v852 = vadd.f32 %v212, %v532
        %v853 = vadd.f32 %v213, %v533
        %v854 = vadd.f32 %v214, %v534
        %v855 = vadd.f32 %v215, %v535
        %v856 = vadd.f32 %v216, %v536
        %v857 = vadd.f32 %v217, %v537
        %v858 = vadd.f32 %v218, %v538
        %v859 = vadd.f32 %v219, %v539
        %v860 = vadd.f32 %v220, %v540
        %v861 = vadd.f32 %v221, %v541
        %v862 = vadd.f32 %v222, %v542
        %v863 = vadd.f32 %v223, %v543
        %v864 = vadd.f32 %v224, %v544
        %v865 = vadd.f32 %v225, %v545
        %v866 = vadd.f32 %v226, %v546
        %v867 = vadd.f32 %v227, %v547
        %v868 = vadd.f32 %v228, %v548
        %v869 = vadd.f32 %v229, %v549
        %v870 = vadd.f32 %v230, %v550
        %v871 = vadd.f32 %v231, %v551
        %v872 = vadd.f32 %v232, %v552
        %v873 = vadd.f32 %v233, %v553
        %v874 = vadd.f32 %v234, %v554
        %v875 = vadd.f32 %v235, %v555
        %v876 = vadd.f32 %v236, %v556
        %v877 = vadd.f32 %v237, %v557
        %v878 = vadd.f32 %v238, %v558
        %v879 = vadd.f32 %v239, %v559
        %v880 = vadd.f32 %v240, %v560
        %v881 = vadd.f32 %v241, %v561
        %v882 = vadd.f32 %v242, %v562
        %v883 = vadd.f32 %v243, %v563
        %v884 = vadd.f32 %v244, %v564
        %v885 = vadd.f32 %v245, %v565
        %v886 = vadd.f32 %v246, %v566
        %v887 = vadd.f32 %v247, %v567
        %v888 = vadd.f32 %v248, %v568
        %v889 = vadd.f32 %v249, %v569
        %v890 = vadd.f32 %v250, %v570
        %v891 = vadd.f32 %v251, %v571
        %v892 = vadd.f32 %v252, %v572
        %v893 = vadd.f32 %v253, %v573
        %v894 = vadd.f32 %v254, %v574
        %v895 = vadd.f32 %v255, %v575
        %v896 = vadd.f32 %v256, %v576
        %v897 = vadd.f32 %v257, %v577
        %v898 = vadd.f32 %v258, %v578
        %v899 = vadd.f32 %v259, %v579
        %v900 = vadd.f32 %v260, %v580
        %v901 = vadd.f32 %v261, %v581
        %v902 = vadd.f32 %v262, %v582
        %v903 = vadd.f32 %v263, %v583
        %v904 = vadd.f32 %v264, %v584
        %v905 = vadd.f32 %v265, %v585
        %v906 = vadd.f32 %v266, %v586
        %v907 = vadd.f32 %v267, %v587
        %v908 = vadd.f32 %v268, %v588
        %v909 = vadd.f32 %v269, %v589
        %v910 = vadd.f32 %v270, %v590
        %v911 = vadd.f32 %v271, %v591
        %v912 = vadd.f32 %v272, %v592
        %v913 = vadd.f32 %v273, %v593
        %v914 = vadd.f32 %v274, %v594
        %v915 = vadd.f32 %v275, %v595
        %v916 = vadd.f32 %v276, %v596
        %v917 = vadd.f32 %v277, %v597
        %v918 = vadd.f32 %v278, %v598
        %v919 = vadd.f32 %v279, %v599
        %v920 = vadd.f32 %v280, %v600
        %v921 = vadd.f32 %v281, %v601
        %v922 = vadd.f32 %v282, %v602
        %v923 = vadd.f32 %v283, %v603
        %v924 = vadd.f32 %v284, %v604
        %v925 = vadd.f32 %v285, %v605
        %v926 = vadd.f32 %v286, %v606
        %v927 = vadd.f32 %v287, %v607
        %v928 = vadd.f32 %v288, %v608
        %v929 = vadd.f32 %v289, %v609
        %v930 = vadd.f32 %v290, %v610
        %v931 = vadd.f32 %v291, %v611
        %v932 = vadd.f32 %v292, %v612
        %v933 = vadd.f32 %v293, %v613
        %v934 = vadd.f32 %v294, %v614
        %v935 = vadd.f32 %v295, %v615
        %v936 = vadd.f32 %v296, %v616
        %v937 = vadd.f32 %v297, %v617
        %v938 = vadd.f32 %v298, %v618
        %v939 = vadd.f32 %v299, %v619
        %v940 = vadd.f32 %v300, %v620
        %v941 = vadd.f32 %v301, %v621
        %v942 = vadd.f32 %v302, %v622
        %v943 = vadd.f32 %v303, %v623
        %v944 = vadd.f32 %v304, %v624
        %v945 = vadd.f32 %v305, %v625
        %v946 = vadd.f32 %v306, %v626
        %v947 = vadd.f32 %v307, %v627
        %v948 = vadd.f32 %v308, %v628
        %v949 = vadd.f32 %v309, %v629
        %v950 = vadd.f32 %v310, %v630
        %v951 = vadd.f32 %v311, %v631
        %v952 = vadd.f32 %v312, %v632
        %v953 = vadd.f32 %v313, %v633
        %v954 = vadd.f32 %v314, %v634
        %v955 = vadd.f32 %v315, %v635
        %v956 = vadd.f32 %v316, %v636
        %v957 = vadd.f32 %v317, %v637
        %v958 = vadd.f32 %v318, %v638
        %v959 = vadd.f32 %v319, %v639
        %v960 = vadd.f32 %v320, %v640
        %v961 = vadd.f32 %v321, %v641
        %v962 = vadd.f32 %v322, %v642
        %v963 = vadd.f32 %v323, %v643
        %v964 = vadd.f32 %v324, %v644
        %v965 = vadd.f32 %v325, %v645
        %v966 = vadd.f32 %v326, %v646
        %v967 = vadd.f32 %v327, %v647
        %v968 = vadd.f32 %v328, %v648
        %v969 = vadd.f32 %v329, %v649
        %v970 = vadd.f32 %v330, %v650
        %v971 = vadd.f32 %v331, %v651
        %v972 = vadd.f32 %v332, %v652
        %v973 = vadd.f32 %v333, %v653
        %v974 = vadd.f32 %v334, %v654
        %v975 = vadd.f32 %v335, %v655
        %v976 = vadd.f32 %v336, %v656
        %v977 = vadd.f32 %v337, %v657
        %v978 = vadd.f32 %v338, %v658
        %v979 = vadd.f32 %v339, %v659
        %v980 = vadd.f32 %v340, %v660
        %v981 = vadd.f32 %v341, %v661
        %v982 = vadd.f32 %v342, %v662
        %v983 = vadd.f32 %v343, %v663
        %v984 = vadd.f32 %v344, %v664
        %v985 = vadd.f32 %v345, %v665
        %v986 = vadd.f32 %v346, %v666
        %v987 = vadd.f32 %v347, %v667
        %v988 = vadd.f32 %v348, %v668
        %v989 = vadd.f32 %v349, %v669
        %v990 = vadd.f32 %v350, %v670
        %v991 = vadd.f32 %v351, %v671
        %v992 = vadd.f32 %v352, %v672
        %v993 = vadd.f32 %v353, %v673
        %v994 = vadd.f32 %v354, %v674
        %v995 = vadd.f32 %v355, %v675
        %v996 = vadd.f32 %v356, %v676
        %v997 = vadd.f32 %v357, %v677
        %v998 = vadd.f32 %v358, %v678
        %v999 = vadd.f32 %v359, %v679
        %v1000 = vadd.f32 %v360, %v680
        %v1001 = vadd.f32 %v361, %v681
        %v1002 = vadd.f32 %v362, %v682
        %v1003 = vadd.f32 %v363, %v683
        %v1004 = vadd.f32 %v364, %v684
        %v1005 = vadd.f32 %v365, %v685
        %v1006 = vadd.f32 %v366, %v686
        %v1007 = vadd.f32 %v367, %v687
        %v1008 = vadd.f32 %v368, %v688
        %v1009 = vadd.f32 %v369, %v689
        %v1010 = vadd.f32 %v370, %v690
        %v1011 = vadd.f32 %v371, %v691
        %v1012 = vadd.f32 %v372, %v692
        %v1013 = vadd.f32 %v373, %v693
        %v1014 = vadd.f32 %v374, %v694
        %v1015 = vadd.f32 %v375, %v695
        %v1016 = vadd.f32 %v376, %v696
        %v1017 = vadd.f32 %v377, %v697
        %v1018 = vadd.f32 %v378, %v698
        %v1019 = vadd.f32 %v379, %v699
        %v1020 = vadd.f32 %v380, %v700
        %v1021 = vadd.f32 %v381, %v701
        %v1022 = vadd.f32 %v382, %v702
        %v1023 = vadd.f32 %v383, %v703
        %v1024 = vadd.f32 %v384, %v704
        %v1025 = vadd.f32 %v385, %v705
        %v1026 = vadd.f32 %v386, %v706
        %v1027 = vadd.f32 %v387, %v707
        %v1028 = vadd.f32 %v388, %v708
        %v1029 = vadd.f32 %v389, %v709
        %v1030 = vadd.f32 %v390, %v710
        %v1031 = vadd.f32 %v391, %v711
        %v1032 = vadd.f32 %v392, %v712
        %v1033 = vadd.f32 %v393, %v713
        %v1034 = vadd.f32 %v394, %v714
        %v1035 = vadd.f32 %v395, %v715
        %v1036 = vadd.f32 %v396, %v716
        %v1037 = vadd.f32 %v397, %v717
        %v1038 = vadd.f32 %v398, %v718
        %v1039 = vadd.f32 %v399, %v719
        %v1040 = vadd.f32 %v400, %v720
        %v1041 = vadd.f32 %v401, %v721
        %v1042 = vadd.f32 %v402, %v722
        %v1043 = vadd.f32 %v403, %v723
        %v1044 = vadd.f32 %v404, %v724
        %v1045 = vadd.f32 %v405, %v725
        %v1046 = vadd.f32 %v406, %v726
        %v1047 = vadd.f32 %v407, %v727
        %v1048 = vadd.f32 %v408, %v728
        %v1049 = vadd.f32 %v409, %v729
        %v1050 = vadd.f32 %v410, %v730
        %v1051 = vadd.f32 %v411, %v731
        %v1052 = vadd.f32 %v412, %v732
        %v1053 = vadd.f32 %v413, %v733
        %v1054 = vadd.f32 %v414, %v734
        %v1055 = vadd.f32 %v415, %v735
        %v1056 = vadd.f32 %v416, %v736
        %v1057 = vadd.f32 %v417, %v737
        %v1058 = vadd.f32 %v418, %v738
        %v1059 = vadd.f32 %v419, %v739
        %v1060 = vadd.f32 %v420, %v740
        %v1061 = vadd.f32 %v421, %v741
        %v1062 = vadd.f32 %v422, %v742
        %v1063 = vadd.f32 %v423, %v743
        %v1064 = vadd.f32 %v424, %v744
        %v1065 = vadd.f32 %v425, %v745
        %v1066 = vadd.f32 %v426, %v746
        %v1067 = vadd.f32 %v427, %v747
        %v1068 = vadd.f32 %v428, %v748
        %v1069 = vadd.f32 %v429, %v749
        %v1070 = vadd.f32 %v430, %v750
        %v1071 = vadd.f32 %v431, %v751
        %v1072 = vadd.f32 %v432, %v752
        %v1073 = vadd.f32 %v433, %v753
        %v1074 = vadd.f32 %v434, %v754
        %v1075 = vadd.f32 %v435, %v755
        %v1076 = vadd.f32 %v436, %v756
        %v1077 = vadd.f32 %v437, %v757
        %v1078 = vadd.f32 %v438, %v758
        %v1079 = vadd.f32 %v439, %v759
        %v1080 = vadd.f32 %v440, %v760
        %v1081 = vadd.f32 %v441, %v761
        %v1082 = vadd.f32 %v442, %v762
        %v1083 = vadd.f32 %v443, %v763
        %v1084 = vadd.f32 %v444, %v764
        %v1085 = vadd.f32 %v445, %v765
        %v1086 = vadd.f32 %v446, %v766
        %v1087 = vadd.f32 %v447, %v767
        %v1088 = vadd.f32 %v448, %v768
        %v1089 = vadd.f32 %v449, %v769
        %v1090 = vadd.f32 %v450, %v770
        %v1091 = vadd.f32 %v451, %v771
        %v1092 = vadd.f32 %v452, %v772
        %v1093 = vadd.f32 %v453, %v773
        %v1094 = vadd.f32 %v454, %v774
        %v1095 = vadd.f32 %v455, %v775
        %v1096 = vadd.f32 %v456, %v776
        %v1097 = vadd.f32 %v457, %v777
        %v1098 = vadd.f32 %v458, %v778
        %v1099 = vadd.f32 %v459, %v779
        %v1100 = vadd.f32 %v460, %v780
        %v1101 = vadd.f32 %v461, %v781
        %v1102 = vadd.f32 %v462, %v782
        %v1103 = vadd.f32 %v463, %v783
        %v1104 = vadd.f32 %v464, %v784
        %v1105 = vadd.f32 %v465, %v785
        %v1106 = vadd.f32 %v466, %v786
        %v1107 = vadd.f32 %v467, %v787
        %v1108 = vadd.f32 %v468, %v788
        %v1109 = vadd.f32 %v469, %v789
        %v1110 = vadd.f32 %v470, %v790
        %v1111 = vadd.f32 %v471, %v791
        %v1112 = vadd.f32 %v472, %v792
        %v1113 = vadd.f32 %v473, %v793
        %v1114 = vadd.f32 %v474, %v794
        %v1115 = vadd.f32 %v475, %v795
        %v1116 = vadd.f32 %v476, %v796
        %v1117 = vadd.f32 %v477, %v797
        %v1118 = vadd.f32 %v478, %v798
        %v1119 = vadd.f32 %v479, %v799
        %v1120 = vadd.f32 %v480, %v800
        %v1121 = vadd.f32 %v481, %v801
        %v1122 = vadd.f32 %v482, %v802
        %v1123 = vadd.f32 %v483, %v803
        %v1124 = vadd.f32 %v484, %v804
        %v1125 = vadd.f32 %v485, %v805
        %v1126 = vadd.f32 %v486, %v806
        %v1127 = vadd.f32 %v487, %v807
        %v1128 = vadd.f32 %v488, %v808
        %v1129 = vadd.f32 %v489, %v809
        %v1130 = vadd.f32 %v490, %v810
        %v1131 = vadd.f32 %v491, %v811
        %v1132 = vadd.f32 %v492, %v812
        %v1133 = vadd.f32 %v493, %v813
        %v1134 = vadd.f32 %v494, %v814
        %v1135 = vadd.f32 %v495, %v815
        %v1136 = vadd.f32 %v496, %v816
        %v1137 = vadd.f32 %v497, %v817
        %v1138 = vadd.f32 %v498, %v818
        %v1139 = vadd.f32 %v499, %v819
        %v1140 = vadd.f32 %v500, %v820
        %v1141 = vadd.f32 %v501, %v821
        %v1142 = vadd.f32 %v502, %v822
        %v1143 = vadd.f32 %v503, %v823
        %v1144 = vadd.f32 %v504, %v824
        %v1145 = vadd.f32 %v505, %v825
        %v1146 = vadd.f32 %v506, %v826
        %v1147 = vadd.f32 %v507, %v827
        %v1148 = vadd.f32 %v508, %v828
        %v1149 = vadd.f32 %v509, %v829
        %v1150 = vadd.f32 %v510, %v830
        %v1151 = vadd.f32 %v511, %v831
        %v1152 = vadd.f32 %v512, %v832
        %v1153 = vadd.f32 %v513, %v833
        %v1154 = vadd.f32 %v514, %v834
        %v1155 = vadd.f32 %v515, %v835
        %v1156 = vadd.f32 %v516, %v836
        %v1157 = vadd.f32 %v517, %v837
        %v1158 = vadd.f32 %v518, %v838
        %v1159 = vadd.f32 %v519, %v839
        %v1160 = vadd.f32 %v520, %v840
        %v1161 = vadd.f32 %v521, %v841
        %v1162 = vadd.f32 %v522, %v842
        %v1163 = vadd.f32 %v523, %v843
        %v1164 = vadd.f32 %v524, %v844
        %v1165 = vadd.f32 %v525, %v845
        %1166 = vst [vmem:[%s202] sm:$0xff] %v846
        %1167 = vst [vmem:[%s202 + $0x8] sm:$0xff] %v847
        %1168 = vst [vmem:[%s202 + $0x10] sm:$0xff] %v848
        %1169 = vst [vmem:[%s202 + $0x18] sm:$0xff] %v849
        %1170 = vst [vmem:[%s202 + $0x20] sm:$0xff] %v850
        %1171 = vst [vmem:[%s202 + $0x28] sm:$0xff] %v851
        %1172 = vst [vmem:[%s202 + $0x30] sm:$0xff] %v852
        %1173 = vst [vmem:[%s202 + $0x38] sm:$0xff] %v853
        %1174 = vst [vmem:[%s202 + $0x40] sm:$0xff] %v854
        %1175 = vst [vmem:[%s202 + $0x48] sm:$0xff] %v855
        %1176 = vst [vmem:[%s202 + $0x50] sm:$0xff] %v856
        %1177 = vst [vmem:[%s202 + $0x58] sm:$0xff] %v857
        %1178 = vst [vmem:[%s202 + $0x60] sm:$0xff] %v858
        %1179 = vst [vmem:[%s202 + $0x68] sm:$0xff] %v859
        %1180 = vst [vmem:[%s202 + $0x70] sm:$0xff] %v860
        %1181 = vst [vmem:[%s202 + $0x78] sm:$0xff] %v861
        %1182 = vst [vmem:[%s202 + $0x80] sm:$0xff] %v862
        %1183 = vst [vmem:[%s202 + $0x88] sm:$0xff] %v863
        %1184 = vst [vmem:[%s202 + $0x90] sm:$0xff] %v864
        %1185 = vst [vmem:[%s202 + $0x98] sm:$0xff] %v865
        %1186 = vst [vmem:[%s202 + $0xa0] sm:$0xff] %v866
        %1187 = vst [vmem:[%s202 + $0xa8] sm:$0xff] %v867
        %1188 = vst [vmem:[%s202 + $0xb0] sm:$0xff] %v868
        %1189 = vst [vmem:[%s202 + $0xb8] sm:$0xff] %v869
        %1190 = vst [vmem:[%s202 + $0xc0] sm:$0xff] %v870
        %1191 = vst [vmem:[%s202 + $0xc8] sm:$0xff] %v871
        %1192 = vst [vmem:[%s202 + $0xd0] sm:$0xff] %v872
        %1193 = vst [vmem:[%s202 + $0xd8] sm:$0xff] %v873
        %1194 = vst [vmem:[%s202 + $0xe0] sm:$0xff] %v874
        %1195 = vst [vmem:[%s202 + $0xe8] sm:$0xff] %v875
        %1196 = vst [vmem:[%s202 + $0xf0] sm:$0xff] %v876
        %1197 = vst [vmem:[%s202 + $0xf8] sm:$0xff] %v877
        %1198 = vst [vmem:[%s202 + $0x100] sm:$0xff] %v878
        %1199 = vst [vmem:[%s202 + $0x108] sm:$0xff] %v879
        %1200 = vst [vmem:[%s202 + $0x110] sm:$0xff] %v880
        %1201 = vst [vmem:[%s202 + $0x118] sm:$0xff] %v881
        %1202 = vst [vmem:[%s202 + $0x120] sm:$0xff] %v882
        %1203 = vst [vmem:[%s202 + $0x128] sm:$0xff] %v883
        %1204 = vst [vmem:[%s202 + $0x130] sm:$0xff] %v884
        %1205 = vst [vmem:[%s202 + $0x138] sm:$0xff] %v885
        %1206 = vst [vmem:[%s202 + $0x140] sm:$0xff] %v886
        %1207 = vst [vmem:[%s202 + $0x148] sm:$0xff] %v887
        %1208 = vst [vmem:[%s202 + $0x150] sm:$0xff] %v888
        %1209 = vst [vmem:[%s202 + $0x158] sm:$0xff] %v889
        %1210 = vst [vmem:[%s202 + $0x160] sm:$0xff] %v890
        %1211 = vst [vmem:[%s202 + $0x168] sm:$0xff] %v891
        %1212 = vst [vmem:[%s202 + $0x170] sm:$0xff] %v892
        %1213 = vst [vmem:[%s202 + $0x178] sm:$0xff] %v893
        %1214 = vst [vmem:[%s202 + $0x180] sm:$0xff] %v894
        %1215 = vst [vmem:[%s202 + $0x188] sm:$0xff] %v895
        %1216 = vst [vmem:[%s202 + $0x190] sm:$0xff] %v896
        %1217 = vst [vmem:[%s202 + $0x198] sm:$0xff] %v897
        %1218 = vst [vmem:[%s202 + $0x1a0] sm:$0xff] %v898
        %1219 = vst [vmem:[%s202 + $0x1a8] sm:$0xff] %v899
        %1220 = vst [vmem:[%s202 + $0x1b0] sm:$0xff] %v900
        %1221 = vst [vmem:[%s202 + $0x1b8] sm:$0xff] %v901
        %1222 = vst [vmem:[%s202 + $0x1c0] sm:$0xff] %v902
        %1223 = vst [vmem:[%s202 + $0x1c8] sm:$0xff] %v903
        %1224 = vst [vmem:[%s202 + $0x1d0] sm:$0xff] %v904
        %1225 = vst [vmem:[%s202 + $0x1d8] sm:$0xff] %v905
        %1226 = vst [vmem:[%s202 + $0x1e0] sm:$0xff] %v906
        %1227 = vst [vmem:[%s202 + $0x1e8] sm:$0xff] %v907
        %1228 = vst [vmem:[%s202 + $0x1f0] sm:$0xff] %v908
        %1229 = vst [vmem:[%s202 + $0x1f8] sm:$0xff] %v909
        %1230 = vst [vmem:[%s202 + $0x200] sm:$0xff] %v910
        %1231 = vst [vmem:[%s202 + $0x208] sm:$0xff] %v911
        %1232 = vst [vmem:[%s202 + $0x210] sm:$0xff] %v912
        %1233 = vst [vmem:[%s202 + $0x218] sm:$0xff] %v913
        %1234 = vst [vmem:[%s202 + $0x220] sm:$0xff] %v914
        %1235 = vst [vmem:[%s202 + $0x228] sm:$0xff] %v915
        %1236 = vst [vmem:[%s202 + $0x230] sm:$0xff] %v916
        %1237 = vst [vmem:[%s202 + $0x238] sm:$0xff] %v917
        %1238 = vst [vmem:[%s202 + $0x240] sm:$0xff] %v918
        %1239 = vst [vmem:[%s202 + $0x248] sm:$0xff] %v919
        %1240 = vst [vmem:[%s202 + $0x250] sm:$0xff] %v920
        %1241 = vst [vmem:[%s202 + $0x258] sm:$0xff] %v921
        %1242 = vst [vmem:[%s202 + $0x260] sm:$0xff] %v922
        %1243 = vst [vmem:[%s202 + $0x268] sm:$0xff] %v923
        %1244 = vst [vmem:[%s202 + $0x270] sm:$0xff] %v924
        %1245 = vst [vmem:[%s202 + $0x278] sm:$0xff] %v925
        %1246 = vst [vmem:[%s202 + $0x280] sm:$0xff] %v926
        %1247 = vst [vmem:[%s202 + $0x288] sm:$0xff] %v927
        %1248 = vst [vmem:[%s202 + $0x290] sm:$0xff] %v928
        %1249 = vst [vmem:[%s202 + $0x298] sm:$0xff] %v929
        %1250 = vst [vmem:[%s202 + $0x2a0] sm:$0xff] %v930
        %1251 = vst [vmem:[%s202 + $0x2a8] sm:$0xff] %v931
        %1252 = vst [vmem:[%s202 + $0x2b0] sm:$0xff] %v932
        %1253 = vst [vmem:[%s202 + $0x2b8] sm:$0xff] %v933
        %1254 = vst [vmem:[%s202 + $0x2c0] sm:$0xff] %v934
        %1255 = vst [vmem:[%s202 + $0x2c8] sm:$0xff] %v935
        %1256 = vst [vmem:[%s202 + $0x2d0] sm:$0xff] %v936
        %1257 = vst [vmem:[%s202 + $0x2d8] sm:$0xff] %v937
        %1258 = vst [vmem:[%s202 + $0x2e0] sm:$0xff] %v938
        %1259 = vst [vmem:[%s202 + $0x2e8] sm:$0xff] %v939
        %1260 = vst [vmem:[%s202 + $0x2f0] sm:$0xff] %v940
        %1261 = vst [vmem:[%s202 + $0x2f8] sm:$0xff] %v941
        %1262 = vst [vmem:[%s202 + $0x300] sm:$0xff] %v942
        %1263 = vst [vmem:[%s202 + $0x308] sm:$0xff] %v943
        %1264 = vst [vmem:[%s202 + $0x310] sm:$0xff] %v944
        %1265 = vst [vmem:[%s202 + $0x318] sm:$0xff] %v945
        %1266 = vst [vmem:[%s202 + $0x320] sm:$0xff] %v946
        %1267 = vst [vmem:[%s202 + $0x328] sm:$0xff] %v947
        %1268 = vst [vmem:[%s202 + $0x330] sm:$0xff] %v948
        %1269 = vst [vmem:[%s202 + $0x338] sm:$0xff] %v949
        %1270 = vst [vmem:[%s202 + $0x340] sm:$0xff] %v950
        %1271 = vst [vmem:[%s202 + $0x348] sm:$0xff] %v951
        %1272 = vst [vmem:[%s202 + $0x350] sm:$0xff] %v952
        %1273 = vst [vmem:[%s202 + $0x358] sm:$0xff] %v953
        %1274 = vst [vmem:[%s202 + $0x360] sm:$0xff] %v954
        %1275 = vst [vmem:[%s202 + $0x368] sm:$0xff] %v955
        %1276 = vst [vmem:[%s202 + $0x370] sm:$0xff] %v956
        %1277 = vst [vmem:[%s202 + $0x378] sm:$0xff] %v957
        %1278 = vst [vmem:[%s202 + $0x380] sm:$0xff] %v958
        %1279 = vst [vmem:[%s202 + $0x388] sm:$0xff] %v959
        %1280 = vst [vmem:[%s202 + $0x390] sm:$0xff] %v960
        %1281 = vst [vmem:[%s202 + $0x398] sm:$0xff] %v961
        %1282 = vst [vmem:[%s202 + $0x3a0] sm:$0xff] %v962
        %1283 = vst [vmem:[%s202 + $0x3a8] sm:$0xff] %v963
        %1284 = vst [vmem:[%s202 + $0x3b0] sm:$0xff] %v964
        %1285 = vst [vmem:[%s202 + $0x3b8] sm:$0xff] %v965
        %1286 = vst [vmem:[%s202 + $0x3c0] sm:$0xff] %v966
        %1287 = vst [vmem:[%s202 + $0x3c8] sm:$0xff] %v967
        %1288 = vst [vmem:[%s202 + $0x3d0] sm:$0xff] %v968
        %1289 = vst [vmem:[%s202 + $0x3d8] sm:$0xff] %v969
        %1290 = vst [vmem:[%s202 + $0x3e0] sm:$0xff] %v970
        %1291 = vst [vmem:[%s202 + $0x3e8] sm:$0xff] %v971
        %1292 = vst [vmem:[%s202 + $0x3f0] sm:$0xff] %v972
        %1293 = vst [vmem:[%s202 + $0x3f8] sm:$0xff] %v973
        %1294 = vst [vmem:[%s202 + $0x400] sm:$0xff] %v974
        %1295 = vst [vmem:[%s202 + $0x408] sm:$0xff] %v975
        %1296 = vst [vmem:[%s202 + $0x410] sm:$0xff] %v976
        %1297 = vst [vmem:[%s202 + $0x418] sm:$0xff] %v977
        %1298 = vst [vmem:[%s202 + $0x420] sm:$0xff] %v978
        %1299 = vst [vmem:[%s202 + $0x428] sm:$0xff] %v979
        %1300 = vst [vmem:[%s202 + $0x430] sm:$0xff] %v980
        %1301 = vst [vmem:[%s202 + $0x438] sm:$0xff] %v981
        %1302 = vst [vmem:[%s202 + $0x440] sm:$0xff] %v982
        %1303 = vst [vmem:[%s202 + $0x448] sm:$0xff] %v983
        %1304 = vst [vmem:[%s202 + $0x450] sm:$0xff] %v984
        %1305 = vst [vmem:[%s202 + $0x458] sm:$0xff] %v985
        %1306 = vst [vmem:[%s202 + $0x460] sm:$0xff] %v986
        %1307 = vst [vmem:[%s202 + $0x468] sm:$0xff] %v987
        %1308 = vst [vmem:[%s202 + $0x470] sm:$0xff] %v988
        %1309 = vst [vmem:[%s202 + $0x478] sm:$0xff] %v989
        %1310 = vst [vmem:[%s202 + $0x480] sm:$0xff] %v990
        %1311 = vst [vmem:[%s202 + $0x488] sm:$0xff] %v991
        %1312 = vst [vmem:[%s202 + $0x490] sm:$0xff] %v992
        %1313 = vst [vmem:[%s202 + $0x498] sm:$0xff] %v993
        %1314 = vst [vmem:[%s202 + $0x4a0] sm:$0xff] %v994
        %1315 = vst [vmem:[%s202 + $0x4a8] sm:$0xff] %v995
        %1316 = vst [vmem:[%s202 + $0x4b0] sm:$0xff] %v996
        %1317 = vst [vmem:[%s202 + $0x4b8] sm:$0xff] %v997
        %1318 = vst [vmem:[%s202 + $0x4c0] sm:$0xff] %v998
        %1319 = vst [vmem:[%s202 + $0x4c8] sm:$0xff] %v999
        %1320 = vst [vmem:[%s202 + $0x4d0] sm:$0xff] %v1000
        %1321 = vst [vmem:[%s202 + $0x4d8] sm:$0xff] %v1001
        %1322 = vst [vmem:[%s202 + $0x4e0] sm:$0xff] %v1002
        %1323 = vst [vmem:[%s202 + $0x4e8] sm:$0xff] %v1003
        %1324 = vst [vmem:[%s202 + $0x4f0] sm:$0xff] %v1004
        %1325 = vst [vmem:[%s202 + $0x4f8] sm:$0xff] %v1005
        %1326 = vst [vmem:[%s202 + $0x500] sm:$0xff] %v1006
        %1327 = vst [vmem:[%s202 + $0x508] sm:$0xff] %v1007
        %1328 = vst [vmem:[%s202 + $0x510] sm:$0xff] %v1008
        %1329 = vst [vmem:[%s202 + $0x518] sm:$0xff] %v1009
        %1330 = vst [vmem:[%s202 + $0x520] sm:$0xff] %v1010
        %1331 = vst [vmem:[%s202 + $0x528] sm:$0xff] %v1011
        %1332 = vst [vmem:[%s202 + $0x530] sm:$0xff] %v1012
        %1333 = vst [vmem:[%s202 + $0x538] sm:$0xff] %v1013
        %1334 = vst [vmem:[%s202 + $0x540] sm:$0xff] %v1014
        %1335 = vst [vmem:[%s202 + $0x548] sm:$0xff] %v1015
        %1336 = vst [vmem:[%s202 + $0x550] sm:$0xff] %v1016
        %1337 = vst [vmem:[%s202 + $0x558] sm:$0xff] %v1017
        %1338 = vst [vmem:[%s202 + $0x560] sm:$0xff] %v1018
        %1339 = vst [vmem:[%s202 + $0x568] sm:$0xff] %v1019
        %1340 = vst [vmem:[%s202 + $0x570] sm:$0xff] %v1020
        %1341 = vst [vmem:[%s202 + $0x578] sm:$0xff] %v1021
        %1342 = vst [vmem:[%s202 + $0x580] sm:$0xff] %v1022
        %1343 = vst [vmem:[%s202 + $0x588] sm:$0xff] %v1023
        %1344 = vst [vmem:[%s202 + $0x590] sm:$0xff] %v1024
        %1345 = vst [vmem:[%s202 + $0x598] sm:$0xff] %v1025
        %1346 = vst [vmem:[%s202 + $0x5a0] sm:$0xff] %v1026
        %1347 = vst [vmem:[%s202 + $0x5a8] sm:$0xff] %v1027
        %1348 = vst [vmem:[%s202 + $0x5b0] sm:$0xff] %v1028
        %1349 = vst [vmem:[%s202 + $0x5b8] sm:$0xff] %v1029
        %1350 = vst [vmem:[%s202 + $0x5c0] sm:$0xff] %v1030
        %1351 = vst [vmem:[%s202 + $0x5c8] sm:$0xff] %v1031
        %1352 = vst [vmem:[%s202 + $0x5d0] sm:$0xff] %v1032
        %1353 = vst [vmem:[%s202 + $0x5d8] sm:$0xff] %v1033
        %1354 = vst [vmem:[%s202 + $0x5e0] sm:$0xff] %v1034
        %1355 = vst [vmem:[%s202 + $0x5e8] sm:$0xff] %v1035
        %1356 = vst [vmem:[%s202 + $0x5f0] sm:$0xff] %v1036
        %1357 = vst [vmem:[%s202 + $0x5f8] sm:$0xff] %v1037
        %1358 = vst [vmem:[%s202 + $0x600] sm:$0xff] %v1038
        %1359 = vst [vmem:[%s202 + $0x608] sm:$0xff] %v1039
        %1360 = vst [vmem:[%s202 + $0x610] sm:$0xff] %v1040
        %1361 = vst [vmem:[%s202 + $0x618] sm:$0xff] %v1041
        %1362 = vst [vmem:[%s202 + $0x620] sm:$0xff] %v1042
        %1363 = vst [vmem:[%s202 + $0x628] sm:$0xff] %v1043
        %1364 = vst [vmem:[%s202 + $0x630] sm:$0xff] %v1044
        %1365 = vst [vmem:[%s202 + $0x638] sm:$0xff] %v1045
        %1366 = vst [vmem:[%s202 + $0x640] sm:$0xff] %v1046
        %1367 = vst [vmem:[%s202 + $0x648] sm:$0xff] %v1047
        %1368 = vst [vmem:[%s202 + $0x650] sm:$0xff] %v1048
        %1369 = vst [vmem:[%s202 + $0x658] sm:$0xff] %v1049
        %1370 = vst [vmem:[%s202 + $0x660] sm:$0xff] %v1050
        %1371 = vst [vmem:[%s202 + $0x668] sm:$0xff] %v1051
        %1372 = vst [vmem:[%s202 + $0x670] sm:$0xff] %v1052
        %1373 = vst [vmem:[%s202 + $0x678] sm:$0xff] %v1053
        %1374 = vst [vmem:[%s202 + $0x680] sm:$0xff] %v1054
        %1375 = vst [vmem:[%s202 + $0x688] sm:$0xff] %v1055
        %1376 = vst [vmem:[%s202 + $0x690] sm:$0xff] %v1056
        %1377 = vst [vmem:[%s202 + $0x698] sm:$0xff] %v1057
        %1378 = vst [vmem:[%s202 + $0x6a0] sm:$0xff] %v1058
        %1379 = vst [vmem:[%s202 + $0x6a8] sm:$0xff] %v1059
        %1380 = vst [vmem:[%s202 + $0x6b0] sm:$0xff] %v1060
        %1381 = vst [vmem:[%s202 + $0x6b8] sm:$0xff] %v1061
        %1382 = vst [vmem:[%s202 + $0x6c0] sm:$0xff] %v1062
        %1383 = vst [vmem:[%s202 + $0x6c8] sm:$0xff] %v1063
        %1384 = vst [vmem:[%s202 + $0x6d0] sm:$0xff] %v1064
        %1385 = vst [vmem:[%s202 + $0x6d8] sm:$0xff] %v1065
        %1386 = vst [vmem:[%s202 + $0x6e0] sm:$0xff] %v1066
        %1387 = vst [vmem:[%s202 + $0x6e8] sm:$0xff] %v1067
        %1388 = vst [vmem:[%s202 + $0x6f0] sm:$0xff] %v1068
        %1389 = vst [vmem:[%s202 + $0x6f8] sm:$0xff] %v1069
        %1390 = vst [vmem:[%s202 + $0x700] sm:$0xff] %v1070
        %1391 = vst [vmem:[%s202 + $0x708] sm:$0xff] %v1071
        %1392 = vst [vmem:[%s202 + $0x710] sm:$0xff] %v1072
        %1393 = vst [vmem:[%s202 + $0x718] sm:$0xff] %v1073
        %1394 = vst [vmem:[%s202 + $0x720] sm:$0xff] %v1074
        %1395 = vst [vmem:[%s202 + $0x728] sm:$0xff] %v1075
        %1396 = vst [vmem:[%s202 + $0x730] sm:$0xff] %v1076
        %1397 = vst [vmem:[%s202 + $0x738] sm:$0xff] %v1077
        %1398 = vst [vmem:[%s202 + $0x740] sm:$0xff] %v1078
        %1399 = vst [vmem:[%s202 + $0x748] sm:$0xff] %v1079
        %1400 = vst [vmem:[%s202 + $0x750] sm:$0xff] %v1080
        %1401 = vst [vmem:[%s202 + $0x758] sm:$0xff] %v1081
        %1402 = vst [vmem:[%s202 + $0x760] sm:$0xff] %v1082
        %1403 = vst [vmem:[%s202 + $0x768] sm:$0xff] %v1083
        %1404 = vst [vmem:[%s202 + $0x770] sm:$0xff] %v1084
        %1405 = vst [vmem:[%s202 + $0x778] sm:$0xff] %v1085
        %1406 = vst [vmem:[%s202 + $0x780] sm:$0xff] %v1086
        %1407 = vst [vmem:[%s202 + $0x788] sm:$0xff] %v1087
        %1408 = vst [vmem:[%s202 + $0x790] sm:$0xff] %v1088
        %1409 = vst [vmem:[%s202 + $0x798] sm:$0xff] %v1089
        %1410 = vst [vmem:[%s202 + $0x7a0] sm:$0xff] %v1090
        %1411 = vst [vmem:[%s202 + $0x7a8] sm:$0xff] %v1091
        %1412 = vst [vmem:[%s202 + $0x7b0] sm:$0xff] %v1092
        %1413 = vst [vmem:[%s202 + $0x7b8] sm:$0xff] %v1093
        %1414 = vst [vmem:[%s202 + $0x7c0] sm:$0xff] %v1094
        %1415 = vst [vmem:[%s202 + $0x7c8] sm:$0xff] %v1095
        %1416 = vst [vmem:[%s202 + $0x7d0] sm:$0xff] %v1096
        %1417 = vst [vmem:[%s202 + $0x7d8] sm:$0xff] %v1097
        %1418 = vst [vmem:[%s202 + $0x7e0] sm:$0xff] %v1098
        %1419 = vst [vmem:[%s202 + $0x7e8] sm:$0xff] %v1099
        %1420 = vst [vmem:[%s202 + $0x7f0] sm:$0xff] %v1100
        %1421 = vst [vmem:[%s202 + $0x7f8] sm:$0xff] %v1101
        %1422 = vst [vmem:[%s202 + $0x800] sm:$0xff] %v1102
        %1423 = vst [vmem:[%s202 + $0x808] sm:$0xff] %v1103
        %1424 = vst [vmem:[%s202 + $0x810] sm:$0xff] %v1104
        %1425 = vst [vmem:[%s202 + $0x818] sm:$0xff] %v1105
        %1426 = vst [vmem:[%s202 + $0x820] sm:$0xff] %v1106
        %1427 = vst [vmem:[%s202 + $0x828] sm:$0xff] %v1107
        %1428 = vst [vmem:[%s202 + $0x830] sm:$0xff] %v1108
        %1429 = vst [vmem:[%s202 + $0x838] sm:$0xff] %v1109
        %1430 = vst [vmem:[%s202 + $0x840] sm:$0xff] %v1110
        %1431 = vst [vmem:[%s202 + $0x848] sm:$0xff] %v1111
        %1432 = vst [vmem:[%s202 + $0x850] sm:$0xff] %v1112
        %1433 = vst [vmem:[%s202 + $0x858] sm:$0xff] %v1113
        %1434 = vst [vmem:[%s202 + $0x860] sm:$0xff] %v1114
        %1435 = vst [vmem:[%s202 + $0x868] sm:$0xff] %v1115
        %1436 = vst [vmem:[%s202 + $0x870] sm:$0xff] %v1116
        %1437 = vst [vmem:[%s202 + $0x878] sm:$0xff] %v1117
        %1438 = vst [vmem:[%s202 + $0x880] sm:$0xff] %v1118
        %1439 = vst [vmem:[%s202 + $0x888] sm:$0xff] %v1119
        %1440 = vst [vmem:[%s202 + $0x890] sm:$0xff] %v1120
        %1441 = vst [vmem:[%s202 + $0x898] sm:$0xff] %v1121
        %1442 = vst [vmem:[%s202 + $0x8a0] sm:$0xff] %v1122
        %1443 = vst [vmem:[%s202 + $0x8a8] sm:$0xff] %v1123
        %1444 = vst [vmem:[%s202 + $0x8b0] sm:$0xff] %v1124
        %1445 = vst [vmem:[%s202 + $0x8b8] sm:$0xff] %v1125
        %1446 = vst [vmem:[%s202 + $0x8c0] sm:$0xff] %v1126
        %1447 = vst [vmem:[%s202 + $0x8c8] sm:$0xff] %v1127
        %1448 = vst [vmem:[%s202 + $0x8d0] sm:$0xff] %v1128
        %1449 = vst [vmem:[%s202 + $0x8d8] sm:$0xff] %v1129
        %1450 = vst [vmem:[%s202 + $0x8e0] sm:$0xff] %v1130
        %1451 = vst [vmem:[%s202 + $0x8e8] sm:$0xff] %v1131
        %1452 = vst [vmem:[%s202 + $0x8f0] sm:$0xff] %v1132
        %1453 = vst [vmem:[%s202 + $0x8f8] sm:$0xff] %v1133
        %1454 = vst [vmem:[%s202 + $0x900] sm:$0xff] %v1134
        %1455 = vst [vmem:[%s202 + $0x908] sm:$0xff] %v1135
        %1456 = vst [vmem:[%s202 + $0x910] sm:$0xff] %v1136
        %1457 = vst [vmem:[%s202 + $0x918] sm:$0xff] %v1137
        %1458 = vst [vmem:[%s202 + $0x920] sm:$0xff] %v1138
        %1459 = vst [vmem:[%s202 + $0x928] sm:$0xff] %v1139
        %1460 = vst [vmem:[%s202 + $0x930] sm:$0xff] %v1140
        %1461 = vst [vmem:[%s202 + $0x938] sm:$0xff] %v1141
        %1462 = vst [vmem:[%s202 + $0x940] sm:$0xff] %v1142
        %1463 = vst [vmem:[%s202 + $0x948] sm:$0xff] %v1143
        %1464 = vst [vmem:[%s202 + $0x950] sm:$0xff] %v1144
        %1465 = vst [vmem:[%s202 + $0x958] sm:$0xff] %v1145
        %1466 = vst [vmem:[%s202 + $0x960] sm:$0xff] %v1146
        %1467 = vst [vmem:[%s202 + $0x968] sm:$0xff] %v1147
        %1468 = vst [vmem:[%s202 + $0x970] sm:$0xff] %v1148
        %1469 = vst [vmem:[%s202 + $0x978] sm:$0xff] %v1149
        %1470 = vst [vmem:[%s202 + $0x980] sm:$0xff] %v1150
        %1471 = vst [vmem:[%s202 + $0x988] sm:$0xff] %v1151
        %1472 = vst [vmem:[%s202 + $0x990] sm:$0xff] %v1152
        %1473 = vst [vmem:[%s202 + $0x998] sm:$0xff] %v1153
        %1474 = vst [vmem:[%s202 + $0x9a0] sm:$0xff] %v1154
        %1475 = vst [vmem:[%s202 + $0x9a8] sm:$0xff] %v1155
        %1476 = vst [vmem:[%s202 + $0x9b0] sm:$0xff] %v1156
        %1477 = vst [vmem:[%s202 + $0x9b8] sm:$0xff] %v1157
        %1478 = vst [vmem:[%s202 + $0x9c0] sm:$0xff] %v1158
        %1479 = vst [vmem:[%s202 + $0x9c8] sm:$0xff] %v1159
        %1480 = vst [vmem:[%s202 + $0x9d0] sm:$0xff] %v1160
        %1481 = vst [vmem:[%s202 + $0x9d8] sm:$0xff] %v1161
        %1482 = vst [vmem:[%s202 + $0x9e0] sm:$0xff] %v1162
        %1483 = vst [vmem:[%s202 + $0x9e8] sm:$0xff] %v1163
        %1484 = vst [vmem:[%s202 + $0x9f0] sm:$0xff] %v1164
        %1485 = vst [vmem:[%s202 + $0x9f8] sm:$0xff] %v1165
        %s1486 = sand.u32 %s96, 1
        %s1487 = scalar_lea.sflag [#allocation4], %s1486
        %s1488 = sand.u32 %s96, 1
        %s1489 = smul.addr %s1488, 2560
        %s1490 = scalar_lea.vmem [#allocation7], %s1489
        // Predicated region
        $region37: #{tpu_custom_call.1} parent=27 // pred_check
          %p1491 = pneg %p106
        $region38: #{tpu_custom_call.1} parent=27 // pred_check_branch
          %1493 = sbr.rel (%p1491) target = $region40
        $region39: #{tpu_custom_call.1} parent=27 // pred_region
          %s1494 = smul.u32 320, %s24
          %s1496 = ssub.s32 40960, 40960
          %1497 = vsyncadd %s1487, %s1496
          %s1498 = smul.addr %s25, 320
          %s1499 = sadd.s32 %s1494, %s1498
          %s1500 = smul.addr %s1499, 128
          %s1501 = scalar_lea.hbm %s2, %s1500
          %s1502 = sshll.u32 %s1490, 4
          %s1503 = int_to_ptr.vmem [resolvable:$true] %s1502
          %1508 = dma.vmem_to_hbm [thread:$0]  %s1503, 40960, %s1501, %s1487, 128, 128, 8
        $region40: #{tpu_custom_call.1} parent=27 // pred_fallthru
          _
      $region28: #{tpu_custom_call.1} parent=5 // pred_fallthru
        _
      %p1509 = scmp.le.s32.totalorder 2, %s15
      // Predicated region
      $region41: #{tpu_custom_call.1} parent=5 // pred_check
        %p1510 = pneg %p1509
      $region42: #{tpu_custom_call.1} parent=5 // pred_check_branch
        %1512 = sbr.rel (%p1510) target = $region44
      $region43: #{tpu_custom_call.1} parent=5 // pred_region
        %s1513 = ssub.s32 %s15, 2
        // Predicated region
        $region45: #{tpu_custom_call.1} parent=43 // pred_check
          %p1514 = pneg %p112
        $region46: #{tpu_custom_call.1} parent=43 // pred_check_branch
          %1516 = sbr.rel (%p1514) target = $region48
        $region47: #{tpu_custom_call.1} parent=43 // pred_region
          %s1517 = sand.u32 %s97, 1
          %s1518 = scalar_lea.sflag [#allocation4], %s1517
          %s1519 = sand.u32 %s97, 1
          %s1520 = smul.addr %s1519, 2560
          %s1521 = scalar_lea.vmem [#allocation7], %s1520
          %1522 = dma.done %s1518, 40960
        $region48: #{tpu_custom_call.1} parent=43 // pred_fallthru
          _
      $region44: #{tpu_custom_call.1} parent=5 // pred_fallthru
        _
    $region6: #{tpu_custom_call.1} parent=1 // loop_footer
      %s19 = sadd.s32 1, %s15
    $region7: #{tpu_custom_call.1} parent=1 // loop_footer_branch
      %14 = sbr.rel target = $region3
    $region8: #{tpu_custom_call.1} parent=1 // loop_exit
      _
    %1523 = vsyncpa [#allocation3], 1
    %s1524 = scalar_lea.sflag [#allocation3], 1
    %1525 = vsyncpa %s1524, 1
    %1526 = vsyncpa [#allocation6], 1
    %1527 = vsyncpa [#allocation4], 1
    %s1528 = scalar_lea.sflag [#allocation4], 1
    %1529 = vsyncpa %s1528, 1

</llo_original>
